<compile_context>
chip_gen: v5e
topology: v5e:2x2
jax: 0.10.0
libtpu: 0.0.40
codegen_flags: <defaults>
</compile_context>

<pallas_src>
import functools
import math

import jax
import jax.numpy as jnp
from jax.experimental import pallas as pl
from jax.experimental.pallas import tpu as pltpu

_INV_SQRT2 = 1.0 / math.sqrt(2.0)
_BN_EPS = 1e-5


def _gelu_exact(x):
    # nn.GELU() default: 0.5 * x * (1 + erf(x / sqrt(2)))
    return 0.5 * x * (1.0 + jax.lax.erf(x * _INV_SQRT2))


def _gelu_bn(z, vec_ref, row, dout, gb, b):
    """bias-add + GELU(erf) + train-mode BatchNorm1d with PER-GROUP stats.

    z: (gb*b, dout) f32.  vec_ref is the packed [12, max_dout] array; rows
    row/row+1/row+2 hold bias / gamma / beta for this layer (first `dout`
    lanes valid).  Returns (gb*b, dout) f32.
    """
    bias = vec_ref[row:row + 1, :dout]            # (1, dout)
    gamma = vec_ref[row + 1:row + 2, :dout]       # (1, dout)
    beta = vec_ref[row + 2:row + 3, :dout]        # (1, dout)

    h = _gelu_exact(z + bias)                     # (gb*b, dout) f32
    h3 = h.reshape(gb, b, dout)                   # split groups out of sublanes

    inv_n = 1.0 / b
    # Single pass over h for both moments; sublane (axis=1) reduce -> XLU.
    s1 = jnp.sum(h3, axis=1, keepdims=True)       # (gb, 1, dout)
    s2 = jnp.sum(h3 * h3, axis=1, keepdims=True)
    mean = s1 * inv_n
    # Clamp: single-pass var can cancel slightly negative for near-constant
    # columns (review correctness concern).
    var = jnp.maximum(s2 * inv_n - mean * mean, 0.0)

    scale = gamma.reshape(1, 1, dout) * jax.lax.rsqrt(var + _BN_EPS)  # EUP slot
    shift = beta.reshape(1, 1, dout) - mean * scale
    # == gamma * (h - mean) / sqrt(var + eps) + beta, per group
    return (h3 * scale + shift).reshape(gb * b, dout)


def _shared_transformation_kernel(douts, s_ref, bl_ref, w1s_ref, w1b_ref,
                                  w2_ref, w3_ref, w4_ref, vec_ref, out_ref):
    gb, b, ds = s_ref.shape
    db = bl_ref.shape[2]
    m = gb * b
    mm_dtype = w1s_ref.dtype                      # bf16 (default) or f32

    # Inputs already cast to mm_dtype in the wrapper (review: no in-kernel cast).
    s = s_ref[...].reshape(m, ds)
    bl = bl_ref[...].reshape(m, db)

    # Layer 1: concat fused into the GEMM -> two partial dots, same FLOPs.
    z = (jnp.dot(s, w1s_ref[...], preferred_element_type=jnp.float32)
         + jnp.dot(bl, w1b_ref[...], preferred_element_type=jnp.float32))
    h = _gelu_bn(z, vec_ref, 0, douts[0], gb, b)

    for i, w_ref in enumerate((w2_ref, w3_ref, w4_ref), start=1):
        z = jnp.dot(h.astype(mm_dtype), w_ref[...],
                    preferred_element_type=jnp.float32)
        h = _gelu_bn(z, vec_ref, 3 * i, douts[i], gb, b)

    out_ref[...] = h.reshape(gb, b, douts[-1]).astype(out_ref.dtype)


def init_params(key, emb_dim_state, emb_dim_belief, hidden_dim_shared):
    """PyTorch-style init, layer shapes matching the module.

    Linear weights stored as [din, dout] (kernel computes x @ W + b),
    U(-1/sqrt(din), 1/sqrt(din)); BatchNorm gamma=1, beta=0.
    """
    dims = [
        (emb_dim_state + emb_dim_belief, 2 * hidden_dim_shared),
        (2 * hidden_dim_shared, 4 * hidden_dim_shared),
        (4 * hidden_dim_shared, 2 * hidden_dim_shared),
        (2 * hidden_dim_shared, hidden_dim_shared),
    ]
    params = []
    for (din, dout) in dims:
        key, kw, kb = jax.random.split(key, 3)
        bound = 1.0 / math.sqrt(din)
        w = jax.random.uniform(kw, (din, dout), jnp.float32, -bound, bound)
        b = jax.random.uniform(kb, (1, dout), jnp.float32, -bound, bound)
        gamma = jnp.ones((1, dout), jnp.float32)
        beta = jnp.zeros((1, dout), jnp.float32)
        params.extend([w, b, gamma, beta])
    return params


def pack_params(params, emb_dim_state, hidden_dim_shared, use_bf16=True):
    """Prepare kernel operands (call once, outside the hot loop).

    Returns (w1_states, w1_beliefs, w2, w3, w4, packed_vecs): weights in bf16
    (default) or f32; packed_vecs is ONE f32 [12, 4H] array holding
    (bias, gamma, beta) x 4 layers, zero-padded along lanes.
    """
    H = hidden_dim_shared
    douts = (2 * H, 4 * H, 2 * H, H)
    max_dout = 4 * H
    w_dtype = jnp.bfloat16 if use_bf16 else jnp.float32

    w1 = params[0]
    w1s = w1[:emb_dim_state].astype(w_dtype)
    w1b = w1[emb_dim_state:].astype(w_dtype)
    weights = [w1s, w1b] + [params[4 * i].astype(w_dtype) for i in range(1, 4)]

    rows = []
    for i, dout in enumerate(douts):
        for v in params[4 * i + 1:4 * i + 4]:        # b, gamma, beta (1, dout)
            v = v.reshape(-1).astype(jnp.float32)
            rows.append(jnp.pad(v, (0, max_dout - dout)))
    vecs = jnp.stack(rows)                            # (12, 4H) f32
    return tuple(weights) + (vecs,)


def _pick_group_block(num_groups, batch, target_m):
    """Largest divisor d of num_groups with d*batch <= target_m (>=1)."""
    best = 1
    for d in range(1, num_groups + 1):
        if num_groups % d == 0 and d * batch <= target_m:
            best = d
    return best


def shared_transformation_batched(states, beliefs, packed, hidden_dim_shared,
                                  *, group_block=None, target_m=256):
    """states: [G, B, Ds], beliefs: [G, B, Db] -> [G, B, H] (f32).

    Each group g is an independent forward pass of the module (BatchNorm
    statistics are taken over that group's batch only).  `group_block` groups
    are fused into one grid step so the GEMM M-dim is Gb*B (target ~256 on
    v6e/v7x, pass target_m=128 on v5e); the grid axis is "parallel".
    """
    G, B, Ds = states.shape
    Db = beliefs.shape[-1]
    H = hidden_dim_shared
    douts = (2 * H, 4 * H, 2 * H, H)
    w1s, w1b, w2, w3, w4, vecs = packed
    mm_dtype = w1s.dtype

    if group_block is None:
        group_block = _pick_group_block(G, B, target_m)
    assert G % group_block == 0, "group_block must divide the group count"
    Gb = group_block
    M = Gb * B

    # Cast streamed activations in the wrapper (halves HBM bytes in bf16 mode).
    states = states.astype(mm_dtype)
    beliefs = beliefs.astype(mm_dtype)

    kernel = functools.partial(_shared_transformation_kernel, douts)

    weight_arrays = (w1s, w1b, w2, w3, w4, vecs)
    weight_bytes = sum(int(a.size) * a.dtype.itemsize for a in weight_arrays)
    itm = jnp.dtype(mm_dtype).itemsize
    stream_bytes = 2 * (M * Ds * itm + M * Db * itm + M * H * 4)   # dbl-buffered tiles
    act_bytes = 6 * M * (4 * H) * 4                                # f32 z/h working set

    flops = 2 * G * B * ((Ds + Db) * 2 * H + 2 * H * 4 * H
                         + 4 * H * 2 * H + 2 * H * H)
    transcendentals = G * B * sum(douts)              # erf per activation
    bytes_accessed = int(
        sum(int(x.size) * x.dtype.itemsize
            for x in (states, beliefs, *weight_arrays)) + G * B * H * 4)
    cost = pl.CostEstimate(flops=flops, transcendentals=transcendentals,
                           bytes_accessed=bytes_accessed)

    def run(single_buffer_weights):
        def fixed(a):  # resident weight / packed-vector spec
            idx = lambda g: (0,) * a.ndim
            if single_buffer_weights:
                # Block index never changes -> second pipeline buffer is waste
                # (matters on v7x 64 MiB VMEM at large H).
                return pl.BlockSpec(a.shape, idx, pipeline_mode=pl.Buffered(1))
            return pl.BlockSpec(a.shape, idx)

        resident = weight_bytes * (1 if single_buffer_weights else 2)
        vmem_limit = int((resident + stream_bytes + act_bytes) * 1.25) + (4 << 20)
        vmem_limit = min(max(vmem_limit, 16 << 20), 64 << 20)

        return pl.pallas_call(
            kernel,
            out_shape=jax.ShapeDtypeStruct((G, B, H), jnp.float32),
            grid=(G // Gb,),
            in_specs=[
                pl.BlockSpec((Gb, B, Ds), lambda g: (g, 0, 0)),
                pl.BlockSpec((Gb, B, Db), lambda g: (g, 0, 0)),
                fixed(w1s), fixed(w1b), fixed(w2), fixed(w3), fixed(w4),
                fixed(vecs),
            ],
            out_specs=pl.BlockSpec((Gb, B, H), lambda g: (g, 0, 0)),
            compiler_params=pltpu.CompilerParams(
                dimension_semantics=("parallel",),
                vmem_limit_bytes=vmem_limit),
            cost_estimate=cost,
        )(states, beliefs, w1s, w1b, w2, w3, w4, vecs)

    try:
        return run(single_buffer_weights=True)
    except Exception:
        # pipeline_mode=pl.Buffered(1) rejected by this jax/libtpu combination:
        # fall back to default (double-buffered) resident weights.
        return run(single_buffer_weights=False)


def shared_transformation(states, beliefs, packed, hidden_dim_shared):
    """Single problem: states [B, Ds], beliefs [B, Db] -> [B, H]."""
    out = shared_transformation_batched(states[None], beliefs[None], packed,
                                        hidden_dim_shared)
    return out[0]


def reference_forward(states, beliefs, params, *, matmul_dtype=jnp.float32,
                      eps=_BN_EPS):
    """Pure-JAX reference mirroring the PyTorch forward (train-mode BN)."""
    x = jnp.concatenate([states, beliefs], axis=1).astype(jnp.float32)
    for i in range(4):
        w, b, g, be = params[4 * i:4 * i + 4]
        z = jnp.dot(x.astype(matmul_dtype), w.astype(matmul_dtype),
                    preferred_element_type=jnp.float32) + b
        h = _gelu_exact(z)
        mean = jnp.mean(h, axis=0, keepdims=True)
        var = jnp.mean((h - mean) ** 2, axis=0, keepdims=True)
        x = (h - mean) / jnp.sqrt(var + eps) * g + be
    return x


if __name__ == "__main__":
    emb_dim_state = 16
    emb_dim_belief = 16
    hidden_dim_shared = 32
    batch = 8
    groups = 6

    key = jax.random.PRNGKey(0)
    k_params, k_s, k_b = jax.random.split(key, 3)
    params = init_params(k_params, emb_dim_state, emb_dim_belief,
                         hidden_dim_shared)

    states = jax.random.normal(k_s, (batch, emb_dim_state), jnp.float32)
    beliefs = jax.random.normal(k_b, (batch, emb_dim_belief), jnp.float32)

    # --- f32 matmul mode: exact parity with the PyTorch-style reference ---
    packed_f32 = pack_params(params, emb_dim_state, hidden_dim_shared,
                             use_bf16=False)
    out_f32 = jax.block_until_ready(
        shared_transformation(states, beliefs, packed_f32, hidden_dim_shared))
    ref_f32 = reference_forward(states, beliefs, params,
                                matmul_dtype=jnp.float32)
    assert out_f32.shape == (batch, hidden_dim_shared)
    assert jnp.allclose(out_f32, ref_f32, atol=1e-4, rtol=1e-4), \
        "f32 kernel mismatch vs reference"

    # --- default bf16-MXU mode (checked against a bf16-matched reference) ---
    packed_bf16 = pack_params(params, emb_dim_state, hidden_dim_shared,
                              use_bf16=True)
    out_bf16 = jax.block_until_ready(
        shared_transformation(states, beliefs, packed_bf16, hidden_dim_shared))
    ref_bf16 = reference_forward(states, beliefs, params,
                                 matmul_dtype=jnp.bfloat16)
    assert jnp.allclose(out_bf16, ref_bf16, atol=2e-2, rtol=2e-2), \
        "bf16 kernel mismatch vs bf16-matched reference"

    # --- batched: G independent problems, all groups fused into one grid step ---
    k_sg, k_bg = jax.random.split(jax.random.PRNGKey(1))
    states_g = jax.random.normal(k_sg, (groups, batch, emb_dim_state),
                                 jnp.float32)
    beliefs_g = jax.random.normal(k_bg, (groups, batch, emb_dim_belief),
                                  jnp.float32)
    out_g = jax.block_until_ready(
        shared_transformation_batched(states_g, beliefs_g, packed_bf16,
                                      hidden_dim_shared))
    ref_g = jnp.stack([
        reference_forward(states_g[i], beliefs_g[i], params,
                          matmul_dtype=jnp.bfloat16)
        for i in range(groups)
    ])
    assert out_g.shape == (groups, batch, hidden_dim_shared)
    assert jnp.allclose(out_g, ref_g, atol=2e-2, rtol=2e-2), \
        "batched kernel mismatch vs per-group reference"

    # --- batched with Gb>1 AND multiple grid steps (group_block=3 -> grid=(2,)) ---
    out_g2 = jax.block_until_ready(
        shared_transformation_batched(states_g, beliefs_g, packed_bf16,
                                      hidden_dim_shared, group_block=3))
    assert jnp.allclose(out_g2, ref_g, atol=2e-2, rtol=2e-2), \
        "group-blocked kernel mismatch vs per-group reference"

    print("KERNEL_OK")
</pallas_src>

<mosaic_0001>
module attributes {stable_mosaic.version = 11 : i64} {
  func.func @_shared_transformation_kernel(%arg0: i32, %arg1: memref<1x8x16xf32, #tpu.memory_space<vmem>>, %arg2: memref<1x8x16xf32, #tpu.memory_space<vmem>>, %arg3: memref<16x64xf32, #tpu.memory_space<vmem>>, %arg4: memref<16x64xf32, #tpu.memory_space<vmem>>, %arg5: memref<64x128xf32, #tpu.memory_space<vmem>>, %arg6: memref<128x64xf32, #tpu.memory_space<vmem>>, %arg7: memref<64x32xf32, #tpu.memory_space<vmem>>, %arg8: memref<12x128xf32, #tpu.memory_space<vmem>>, %arg9: memref<1x8x32xf32, #tpu.memory_space<vmem>>) attributes {dimension_semantics = [#tpu.dimension_semantics<parallel>], iteration_bounds = array<i64: 1>, scalar_prefetch = 0 : i64, scratch_operands = 0 : i64, tpu.core_type = #tpu.core_type<tc>, window_params = [{transform_indices = @transform_0, window_bounds = array<i64: 1, 8, 16>}, {transform_indices = @transform_1, window_bounds = array<i64: 1, 8, 16>}, {pipeline_mode = #tpu.pipeline_mode<synchronous>, transform_indices = @transform_2, window_bounds = array<i64: 16, 64>}, {pipeline_mode = #tpu.pipeline_mode<synchronous>, transform_indices = @transform_3, window_bounds = array<i64: 16, 64>}, {pipeline_mode = #tpu.pipeline_mode<synchronous>, transform_indices = @transform_4, window_bounds = array<i64: 64, 128>}, {pipeline_mode = #tpu.pipeline_mode<synchronous>, transform_indices = @transform_5, window_bounds = array<i64: 128, 64>}, {pipeline_mode = #tpu.pipeline_mode<synchronous>, transform_indices = @transform_6, window_bounds = array<i64: 64, 32>}, {pipeline_mode = #tpu.pipeline_mode<synchronous>, transform_indices = @transform_7, window_bounds = array<i64: 12, 128>}, {transform_indices = @transform_8, window_bounds = array<i64: 1, 8, 32>}]} {
    %c0 = arith.constant 0 : index
    %c0_0 = arith.constant 0 : index
    %c0_1 = arith.constant 0 : index
    %0 = vector.load %arg1[%c0, %c0_0, %c0_1] : memref<1x8x16xf32, #tpu.memory_space<vmem>>, vector<1x8x16xf32>
    %1 = vector.shape_cast %0 : vector<1x8x16xf32> to vector<8x16xf32>
    %c0_2 = arith.constant 0 : index
    %c0_3 = arith.constant 0 : index
    %c0_4 = arith.constant 0 : index
    %2 = vector.load %arg2[%c0_2, %c0_3, %c0_4] : memref<1x8x16xf32, #tpu.memory_space<vmem>>, vector<1x8x16xf32>
    %3 = vector.shape_cast %2 : vector<1x8x16xf32> to vector<8x16xf32>
    %c0_5 = arith.constant 0 : index
    %c0_6 = arith.constant 0 : index
    %4 = vector.load %arg3[%c0_5, %c0_6] : memref<16x64xf32, #tpu.memory_space<vmem>>, vector<16x64xf32>
    %cst = arith.constant dense<0.000000e+00> : vector<8x64xf32>
    %5 = tpu.matmul %1, %4, %cst {dimension_numbers = #tpu.dot_dimension_numbers<[1], [0], [0], [1], [0, 0, 1, 1], [], []>} : vector<8x16xf32>, vector<16x64xf32>, vector<8x64xf32> -> vector<8x64xf32>
    %c0_7 = arith.constant 0 : index
    %c0_8 = arith.constant 0 : index
    %6 = vector.load %arg4[%c0_7, %c0_8] : memref<16x64xf32, #tpu.memory_space<vmem>>, vector<16x64xf32>
    %cst_9 = arith.constant dense<0.000000e+00> : vector<8x64xf32>
    %7 = tpu.matmul %3, %6, %cst_9 {dimension_numbers = #tpu.dot_dimension_numbers<[1], [0], [0], [1], [0, 0, 1, 1], [], []>} : vector<8x16xf32>, vector<16x64xf32>, vector<8x64xf32> -> vector<8x64xf32>
    %8 = arith.addf %5, %7 : vector<8x64xf32>
    %c0_10 = arith.constant 0 : index
    %c0_11 = arith.constant 0 : index
    %9 = vector.load %arg8[%c0_10, %c0_11] : memref<12x128xf32, #tpu.memory_space<vmem>>, vector<1x64xf32>
    %c1 = arith.constant 1 : index
    %c0_12 = arith.constant 0 : index
    %10 = vector.load %arg8[%c1, %c0_12] : memref<12x128xf32, #tpu.memory_space<vmem>>, vector<1x64xf32>
    %c2 = arith.constant 2 : index
    %c0_13 = arith.constant 0 : index
    %11 = vector.load %arg8[%c2, %c0_13] : memref<12x128xf32, #tpu.memory_space<vmem>>, vector<1x64xf32>
    %12 = vector.broadcast %9 : vector<1x64xf32> to vector<8x64xf32>
    %13 = arith.addf %8, %12 : vector<8x64xf32>
    %cst_14 = arith.constant 5.000000e-01 : f32
    %14 = vector.broadcast %cst_14 : f32 to vector<8x64xf32>
    %15 = arith.mulf %14, %13 : vector<8x64xf32>
    %cst_15 = arith.constant 0.707106769 : f32
    %16 = vector.broadcast %cst_15 : f32 to vector<8x64xf32>
    %17 = arith.mulf %13, %16 : vector<8x64xf32>
    %18 = math.erf %17 : vector<8x64xf32>
    %cst_16 = arith.constant 1.000000e+00 : f32
    %19 = vector.broadcast %cst_16 : f32 to vector<8x64xf32>
    %20 = arith.addf %19, %18 : vector<8x64xf32>
    %21 = arith.mulf %15, %20 : vector<8x64xf32>
    %22 = vector.shape_cast %21 : vector<8x64xf32> to vector<1x8x64xf32>
    %cst_17 = arith.constant dense<0.000000e+00> : vector<1x64xf32>
    %23 = vector.multi_reduction <add>, %22, %cst_17 [1] : vector<1x8x64xf32> to vector<1x64xf32>
    %24 = vector.shape_cast %23 : vector<1x64xf32> to vector<1x1x64xf32>
    %25 = arith.mulf %22, %22 : vector<1x8x64xf32>
    %cst_18 = arith.constant dense<0.000000e+00> : vector<1x64xf32>
    %26 = vector.multi_reduction <add>, %25, %cst_18 [1] : vector<1x8x64xf32> to vector<1x64xf32>
    %27 = vector.shape_cast %26 : vector<1x64xf32> to vector<1x1x64xf32>
    %cst_19 = arith.constant 1.250000e-01 : f32
    %28 = vector.broadcast %cst_19 : f32 to vector<1x1x64xf32>
    %29 = arith.mulf %24, %28 : vector<1x1x64xf32>
    %cst_20 = arith.constant 1.250000e-01 : f32
    %30 = vector.broadcast %cst_20 : f32 to vector<1x1x64xf32>
    %31 = arith.mulf %27, %30 : vector<1x1x64xf32>
    %32 = arith.mulf %29, %29 : vector<1x1x64xf32>
    %33 = arith.subf %31, %32 : vector<1x1x64xf32>
    %cst_21 = arith.constant 0.000000e+00 : f32
    %34 = vector.broadcast %cst_21 : f32 to vector<1x1x64xf32>
    %35 = arith.maximumf %33, %34 : vector<1x1x64xf32>
    %36 = vector.shape_cast %10 : vector<1x64xf32> to vector<1x1x64xf32>
    %cst_22 = arith.constant 9.99999974E-6 : f32
    %37 = vector.broadcast %cst_22 : f32 to vector<1x1x64xf32>
    %38 = arith.addf %35, %37 : vector<1x1x64xf32>
    %39 = math.rsqrt %38 : vector<1x1x64xf32>
    %40 = arith.mulf %36, %39 : vector<1x1x64xf32>
    %41 = vector.shape_cast %11 : vector<1x64xf32> to vector<1x1x64xf32>
    %42 = arith.mulf %29, %40 : vector<1x1x64xf32>
    %43 = arith.subf %41, %42 : vector<1x1x64xf32>
    %44 = vector.broadcast %40 : vector<1x1x64xf32> to vector<1x8x64xf32>
    %45 = arith.mulf %22, %44 : vector<1x8x64xf32>
    %46 = vector.broadcast %43 : vector<1x1x64xf32> to vector<1x8x64xf32>
    %47 = arith.addf %45, %46 : vector<1x8x64xf32>
    %48 = vector.shape_cast %47 : vector<1x8x64xf32> to vector<8x64xf32>
    %c0_23 = arith.constant 0 : index
    %c0_24 = arith.constant 0 : index
    %49 = vector.load %arg5[%c0_23, %c0_24] : memref<64x128xf32, #tpu.memory_space<vmem>>, vector<64x128xf32>
    %cst_25 = arith.constant dense<0.000000e+00> : vector<8x128xf32>
    %50 = tpu.matmul %48, %49, %cst_25 {dimension_numbers = #tpu.dot_dimension_numbers<[1], [0], [0], [1], [0, 0, 1, 1], [], []>} : vector<8x64xf32>, vector<64x128xf32>, vector<8x128xf32> -> vector<8x128xf32>
    %c3 = arith.constant 3 : index
    %c0_26 = arith.constant 0 : index
    %51 = vector.load %arg8[%c3, %c0_26] : memref<12x128xf32, #tpu.memory_space<vmem>>, vector<1x128xf32>
    %c4 = arith.constant 4 : index
    %c0_27 = arith.constant 0 : index
    %52 = vector.load %arg8[%c4, %c0_27] : memref<12x128xf32, #tpu.memory_space<vmem>>, vector<1x128xf32>
    %c5 = arith.constant 5 : index
    %c0_28 = arith.constant 0 : index
    %53 = vector.load %arg8[%c5, %c0_28] : memref<12x128xf32, #tpu.memory_space<vmem>>, vector<1x128xf32>
    %54 = vector.broadcast %51 : vector<1x128xf32> to vector<8x128xf32>
    %55 = arith.addf %50, %54 : vector<8x128xf32>
    %cst_29 = arith.constant 5.000000e-01 : f32
    %56 = vector.broadcast %cst_29 : f32 to vector<8x128xf32>
    %57 = arith.mulf %56, %55 : vector<8x128xf32>
    %cst_30 = arith.constant 0.707106769 : f32
    %58 = vector.broadcast %cst_30 : f32 to vector<8x128xf32>
    %59 = arith.mulf %55, %58 : vector<8x128xf32>
    %60 = math.erf %59 : vector<8x128xf32>
    %cst_31 = arith.constant 1.000000e+00 : f32
    %61 = vector.broadcast %cst_31 : f32 to vector<8x128xf32>
    %62 = arith.addf %61, %60 : vector<8x128xf32>
    %63 = arith.mulf %57, %62 : vector<8x128xf32>
    %64 = vector.shape_cast %63 : vector<8x128xf32> to vector<1x8x128xf32>
    %cst_32 = arith.constant dense<0.000000e+00> : vector<1x128xf32>
    %65 = vector.multi_reduction <add>, %64, %cst_32 [1] : vector<1x8x128xf32> to vector<1x128xf32>
    %66 = vector.shape_cast %65 : vector<1x128xf32> to vector<1x1x128xf32>
    %67 = arith.mulf %64, %64 : vector<1x8x128xf32>
    %cst_33 = arith.constant dense<0.000000e+00> : vector<1x128xf32>
    %68 = vector.multi_reduction <add>, %67, %cst_33 [1] : vector<1x8x128xf32> to vector<1x128xf32>
    %69 = vector.shape_cast %68 : vector<1x128xf32> to vector<1x1x128xf32>
    %cst_34 = arith.constant 1.250000e-01 : f32
    %70 = vector.broadcast %cst_34 : f32 to vector<1x1x128xf32>
    %71 = arith.mulf %66, %70 : vector<1x1x128xf32>
    %cst_35 = arith.constant 1.250000e-01 : f32
    %72 = vector.broadcast %cst_35 : f32 to vector<1x1x128xf32>
    %73 = arith.mulf %69, %72 : vector<1x1x128xf32>
    %74 = arith.mulf %71, %71 : vector<1x1x128xf32>
    %75 = arith.subf %73, %74 : vector<1x1x128xf32>
    %cst_36 = arith.constant 0.000000e+00 : f32
    %76 = vector.broadcast %cst_36 : f32 to vector<1x1x128xf32>
    %77 = arith.maximumf %75, %76 : vector<1x1x128xf32>
    %78 = vector.shape_cast %52 : vector<1x128xf32> to vector<1x1x128xf32>
    %cst_37 = arith.constant 9.99999974E-6 : f32
    %79 = vector.broadcast %cst_37 : f32 to vector<1x1x128xf32>
    %80 = arith.addf %77, %79 : vector<1x1x128xf32>
    %81 = math.rsqrt %80 : vector<1x1x128xf32>
    %82 = arith.mulf %78, %81 : vector<1x1x128xf32>
    %83 = vector.shape_cast %53 : vector<1x128xf32> to vector<1x1x128xf32>
    %84 = arith.mulf %71, %82 : vector<1x1x128xf32>
    %85 = arith.subf %83, %84 : vector<1x1x128xf32>
    %86 = vector.broadcast %82 : vector<1x1x128xf32> to vector<1x8x128xf32>
    %87 = arith.mulf %64, %86 : vector<1x8x128xf32>
    %88 = vector.broadcast %85 : vector<1x1x128xf32> to vector<1x8x128xf32>
    %89 = arith.addf %87, %88 : vector<1x8x128xf32>
    %90 = vector.shape_cast %89 : vector<1x8x128xf32> to vector<8x128xf32>
    %c0_38 = arith.constant 0 : index
    %c0_39 = arith.constant 0 : index
    %91 = vector.load %arg6[%c0_38, %c0_39] : memref<128x64xf32, #tpu.memory_space<vmem>>, vector<128x64xf32>
    %cst_40 = arith.constant dense<0.000000e+00> : vector<8x64xf32>
    %92 = tpu.matmul %90, %91, %cst_40 {dimension_numbers = #tpu.dot_dimension_numbers<[1], [0], [0], [1], [0, 0, 1, 1], [], []>} : vector<8x128xf32>, vector<128x64xf32>, vector<8x64xf32> -> vector<8x64xf32>
    %c6 = arith.constant 6 : index
    %c0_41 = arith.constant 0 : index
    %93 = vector.load %arg8[%c6, %c0_41] : memref<12x128xf32, #tpu.memory_space<vmem>>, vector<1x64xf32>
    %c7 = arith.constant 7 : index
    %c0_42 = arith.constant 0 : index
    %94 = vector.load %arg8[%c7, %c0_42] : memref<12x128xf32, #tpu.memory_space<vmem>>, vector<1x64xf32>
    %c8 = arith.constant 8 : index
    %c0_43 = arith.constant 0 : index
    %95 = vector.load %arg8[%c8, %c0_43] : memref<12x128xf32, #tpu.memory_space<vmem>>, vector<1x64xf32>
    %96 = vector.broadcast %93 : vector<1x64xf32> to vector<8x64xf32>
    %97 = arith.addf %92, %96 : vector<8x64xf32>
    %cst_44 = arith.constant 5.000000e-01 : f32
    %98 = vector.broadcast %cst_44 : f32 to vector<8x64xf32>
    %99 = arith.mulf %98, %97 : vector<8x64xf32>
    %cst_45 = arith.constant 0.707106769 : f32
    %100 = vector.broadcast %cst_45 : f32 to vector<8x64xf32>
    %101 = arith.mulf %97, %100 : vector<8x64xf32>
    %102 = math.erf %101 : vector<8x64xf32>
    %cst_46 = arith.constant 1.000000e+00 : f32
    %103 = vector.broadcast %cst_46 : f32 to vector<8x64xf32>
    %104 = arith.addf %103, %102 : vector<8x64xf32>
    %105 = arith.mulf %99, %104 : vector<8x64xf32>
    %106 = vector.shape_cast %105 : vector<8x64xf32> to vector<1x8x64xf32>
    %cst_47 = arith.constant dense<0.000000e+00> : vector<1x64xf32>
    %107 = vector.multi_reduction <add>, %106, %cst_47 [1] : vector<1x8x64xf32> to vector<1x64xf32>
    %108 = vector.shape_cast %107 : vector<1x64xf32> to vector<1x1x64xf32>
    %109 = arith.mulf %106, %106 : vector<1x8x64xf32>
    %cst_48 = arith.constant dense<0.000000e+00> : vector<1x64xf32>
    %110 = vector.multi_reduction <add>, %109, %cst_48 [1] : vector<1x8x64xf32> to vector<1x64xf32>
    %111 = vector.shape_cast %110 : vector<1x64xf32> to vector<1x1x64xf32>
    %cst_49 = arith.constant 1.250000e-01 : f32
    %112 = vector.broadcast %cst_49 : f32 to vector<1x1x64xf32>
    %113 = arith.mulf %108, %112 : vector<1x1x64xf32>
    %cst_50 = arith.constant 1.250000e-01 : f32
    %114 = vector.broadcast %cst_50 : f32 to vector<1x1x64xf32>
    %115 = arith.mulf %111, %114 : vector<1x1x64xf32>
    %116 = arith.mulf %113, %113 : vector<1x1x64xf32>
    %117 = arith.subf %115, %116 : vector<1x1x64xf32>
    %cst_51 = arith.constant 0.000000e+00 : f32
    %118 = vector.broadcast %cst_51 : f32 to vector<1x1x64xf32>
    %119 = arith.maximumf %117, %118 : vector<1x1x64xf32>
    %120 = vector.shape_cast %94 : vector<1x64xf32> to vector<1x1x64xf32>
    %cst_52 = arith.constant 9.99999974E-6 : f32
    %121 = vector.broadcast %cst_52 : f32 to vector<1x1x64xf32>
    %122 = arith.addf %119, %121 : vector<1x1x64xf32>
    %123 = math.rsqrt %122 : vector<1x1x64xf32>
    %124 = arith.mulf %120, %123 : vector<1x1x64xf32>
    %125 = vector.shape_cast %95 : vector<1x64xf32> to vector<1x1x64xf32>
    %126 = arith.mulf %113, %124 : vector<1x1x64xf32>
    %127 = arith.subf %125, %126 : vector<1x1x64xf32>
    %128 = vector.broadcast %124 : vector<1x1x64xf32> to vector<1x8x64xf32>
    %129 = arith.mulf %106, %128 : vector<1x8x64xf32>
    %130 = vector.broadcast %127 : vector<1x1x64xf32> to vector<1x8x64xf32>
    %131 = arith.addf %129, %130 : vector<1x8x64xf32>
    %132 = vector.shape_cast %131 : vector<1x8x64xf32> to vector<8x64xf32>
    %c0_53 = arith.constant 0 : index
    %c0_54 = arith.constant 0 : index
    %133 = vector.load %arg7[%c0_53, %c0_54] : memref<64x32xf32, #tpu.memory_space<vmem>>, vector<64x32xf32>
    %cst_55 = arith.constant dense<0.000000e+00> : vector<8x32xf32>
    %134 = tpu.matmul %132, %133, %cst_55 {dimension_numbers = #tpu.dot_dimension_numbers<[1], [0], [0], [1], [0, 0, 1, 1], [], []>} : vector<8x64xf32>, vector<64x32xf32>, vector<8x32xf32> -> vector<8x32xf32>
    %c9 = arith.constant 9 : index
    %c0_56 = arith.constant 0 : index
    %135 = vector.load %arg8[%c9, %c0_56] : memref<12x128xf32, #tpu.memory_space<vmem>>, vector<1x32xf32>
    %c10 = arith.constant 10 : index
    %c0_57 = arith.constant 0 : index
    %136 = vector.load %arg8[%c10, %c0_57] : memref<12x128xf32, #tpu.memory_space<vmem>>, vector<1x32xf32>
    %c11 = arith.constant 11 : index
    %c0_58 = arith.constant 0 : index
    %137 = vector.load %arg8[%c11, %c0_58] : memref<12x128xf32, #tpu.memory_space<vmem>>, vector<1x32xf32>
    %138 = vector.broadcast %135 : vector<1x32xf32> to vector<8x32xf32>
    %139 = arith.addf %134, %138 : vector<8x32xf32>
    %cst_59 = arith.constant 5.000000e-01 : f32
    %140 = vector.broadcast %cst_59 : f32 to vector<8x32xf32>
    %141 = arith.mulf %140, %139 : vector<8x32xf32>
    %cst_60 = arith.constant 0.707106769 : f32
    %142 = vector.broadcast %cst_60 : f32 to vector<8x32xf32>
    %143 = arith.mulf %139, %142 : vector<8x32xf32>
    %144 = math.erf %143 : vector<8x32xf32>
    %cst_61 = arith.constant 1.000000e+00 : f32
    %145 = vector.broadcast %cst_61 : f32 to vector<8x32xf32>
    %146 = arith.addf %145, %144 : vector<8x32xf32>
    %147 = arith.mulf %141, %146 : vector<8x32xf32>
    %148 = vector.shape_cast %147 : vector<8x32xf32> to vector<1x8x32xf32>
    %cst_62 = arith.constant dense<0.000000e+00> : vector<1x32xf32>
    %149 = vector.multi_reduction <add>, %148, %cst_62 [1] : vector<1x8x32xf32> to vector<1x32xf32>
    %150 = vector.shape_cast %149 : vector<1x32xf32> to vector<1x1x32xf32>
    %151 = arith.mulf %148, %148 : vector<1x8x32xf32>
    %cst_63 = arith.constant dense<0.000000e+00> : vector<1x32xf32>
    %152 = vector.multi_reduction <add>, %151, %cst_63 [1] : vector<1x8x32xf32> to vector<1x32xf32>
    %153 = vector.shape_cast %152 : vector<1x32xf32> to vector<1x1x32xf32>
    %cst_64 = arith.constant 1.250000e-01 : f32
    %154 = vector.broadcast %cst_64 : f32 to vector<1x1x32xf32>
    %155 = arith.mulf %150, %154 : vector<1x1x32xf32>
    %cst_65 = arith.constant 1.250000e-01 : f32
    %156 = vector.broadcast %cst_65 : f32 to vector<1x1x32xf32>
    %157 = arith.mulf %153, %156 : vector<1x1x32xf32>
    %158 = arith.mulf %155, %155 : vector<1x1x32xf32>
    %159 = arith.subf %157, %158 : vector<1x1x32xf32>
    %cst_66 = arith.constant 0.000000e+00 : f32
    %160 = vector.broadcast %cst_66 : f32 to vector<1x1x32xf32>
    %161 = arith.maximumf %159, %160 : vector<1x1x32xf32>
    %162 = vector.shape_cast %136 : vector<1x32xf32> to vector<1x1x32xf32>
    %cst_67 = arith.constant 9.99999974E-6 : f32
    %163 = vector.broadcast %cst_67 : f32 to vector<1x1x32xf32>
    %164 = arith.addf %161, %163 : vector<1x1x32xf32>
    %165 = math.rsqrt %164 : vector<1x1x32xf32>
    %166 = arith.mulf %162, %165 : vector<1x1x32xf32>
    %167 = vector.shape_cast %137 : vector<1x32xf32> to vector<1x1x32xf32>
    %168 = arith.mulf %155, %166 : vector<1x1x32xf32>
    %169 = arith.subf %167, %168 : vector<1x1x32xf32>
    %170 = vector.broadcast %166 : vector<1x1x32xf32> to vector<1x8x32xf32>
    %171 = arith.mulf %148, %170 : vector<1x8x32xf32>
    %172 = vector.broadcast %169 : vector<1x1x32xf32> to vector<1x8x32xf32>
    %173 = arith.addf %171, %172 : vector<1x8x32xf32>
    %174 = vector.shape_cast %173 : vector<1x8x32xf32> to vector<8x32xf32>
    %175 = vector.shape_cast %174 : vector<8x32xf32> to vector<1x8x32xf32>
    %c0_68 = arith.constant 0 : index
    %c0_69 = arith.constant 0 : index
    %c0_70 = arith.constant 0 : index
    %176 = vector.load %arg9[%c0_68, %c0_69, %c0_70] : memref<1x8x32xf32, #tpu.memory_space<vmem>>, vector<1x8x32xf32>
    tpu.vector_store %arg9[%c0_68, %c0_69, %c0_70], %175 {strides = array<i32>} : memref<1x8x32xf32, #tpu.memory_space<vmem>>, vector<1x8x32xf32>,
    return
  }
  func.func @transform_0(%arg0: i32) -> (i32, i32, i32) {
    %c0_i32 = arith.constant 0 : i32
    %c0_i32_0 = arith.constant 0 : i32
    %c0_i32_1 = arith.constant 0 : i32
    return %arg0, %c0_i32, %c0_i32_0 : i32, i32, i32
  }
  func.func @transform_1(%arg0: i32) -> (i32, i32, i32) {
    %c0_i32 = arith.constant 0 : i32
    %c0_i32_0 = arith.constant 0 : i32
    %c0_i32_1 = arith.constant 0 : i32
    return %arg0, %c0_i32, %c0_i32_0 : i32, i32, i32
  }
  func.func @transform_2(%arg0: i32) -> (i32, i32) {
    %c0_i32 = arith.constant 0 : i32
    %c0_i32_0 = arith.constant 0 : i32
    %c0_i32_1 = arith.constant 0 : i32
    return %c0_i32, %c0_i32_0 : i32, i32
  }
  func.func @transform_3(%arg0: i32) -> (i32, i32) {
    %c0_i32 = arith.constant 0 : i32
    %c0_i32_0 = arith.constant 0 : i32
    %c0_i32_1 = arith.constant 0 : i32
    return %c0_i32, %c0_i32_0 : i32, i32
  }
  func.func @transform_4(%arg0: i32) -> (i32, i32) {
    %c0_i32 = arith.constant 0 : i32
    %c0_i32_0 = arith.constant 0 : i32
    %c0_i32_1 = arith.constant 0 : i32
    return %c0_i32, %c0_i32_0 : i32, i32
  }
  func.func @transform_5(%arg0: i32) -> (i32, i32) {
    %c0_i32 = arith.constant 0 : i32
    %c0_i32_0 = arith.constant 0 : i32
    %c0_i32_1 = arith.constant 0 : i32
    return %c0_i32, %c0_i32_0 : i32, i32
  }
  func.func @transform_6(%arg0: i32) -> (i32, i32) {
    %c0_i32 = arith.constant 0 : i32
    %c0_i32_0 = arith.constant 0 : i32
    %c0_i32_1 = arith.constant 0 : i32
    return %c0_i32, %c0_i32_0 : i32, i32
  }
  func.func @transform_7(%arg0: i32) -> (i32, i32) {
    %c0_i32 = arith.constant 0 : i32
    %c0_i32_0 = arith.constant 0 : i32
    %c0_i32_1 = arith.constant 0 : i32
    return %c0_i32, %c0_i32_0 : i32, i32
  }
  func.func @transform_8(%arg0: i32) -> (i32, i32, i32) {
    %c0_i32 = arith.constant 0 : i32
    %c0_i32_0 = arith.constant 0 : i32
    %c0_i32_1 = arith.constant 0 : i32
    return %arg0, %c0_i32, %c0_i32_0 : i32, i32, i32
  }
}

module attributes {stable_mosaic.version = 11 : i64} {
  func.func @_shared_transformation_kernel(%arg0: i32, %arg1: memref<1x8x16xf32, #tpu.memory_space<vmem>>, %arg2: memref<1x8x16xf32, #tpu.memory_space<vmem>>, %arg3: memref<16x64xf32, #tpu.memory_space<vmem>>, %arg4: memref<16x64xf32, #tpu.memory_space<vmem>>, %arg5: memref<64x128xf32, #tpu.memory_space<vmem>>, %arg6: memref<128x64xf32, #tpu.memory_space<vmem>>, %arg7: memref<64x32xf32, #tpu.memory_space<vmem>>, %arg8: memref<12x128xf32, #tpu.memory_space<vmem>>, %arg9: memref<1x8x32xf32, #tpu.memory_space<vmem>>) attributes {dimension_semantics = [#tpu.dimension_semantics<parallel>], iteration_bounds = array<i64: 1>, scalar_prefetch = 0 : i64, scratch_operands = 0 : i64, tpu.core_type = #tpu.core_type<tc>, window_params = [{transform_indices = @transform_0, window_bounds = array<i64: 1, 8, 16>}, {transform_indices = @transform_1, window_bounds = array<i64: 1, 8, 16>}, {pipeline_mode = #tpu.pipeline_mode<synchronous>, transform_indices = @transform_2, window_bounds = array<i64: 16, 64>}, {pipeline_mode = #tpu.pipeline_mode<synchronous>, transform_indices = @transform_3, window_bounds = array<i64: 16, 64>}, {pipeline_mode = #tpu.pipeline_mode<synchronous>, transform_indices = @transform_4, window_bounds = array<i64: 64, 128>}, {pipeline_mode = #tpu.pipeline_mode<synchronous>, transform_indices = @transform_5, window_bounds = array<i64: 128, 64>}, {pipeline_mode = #tpu.pipeline_mode<synchronous>, transform_indices = @transform_6, window_bounds = array<i64: 64, 32>}, {pipeline_mode = #tpu.pipeline_mode<synchronous>, transform_indices = @transform_7, window_bounds = array<i64: 12, 128>}, {transform_indices = @transform_8, window_bounds = array<i64: 1, 8, 32>}]} {
    %c0 = arith.constant 0 : index
    %c0_0 = arith.constant 0 : index
    %c0_1 = arith.constant 0 : index
    %0 = vector.load %arg1[%c0, %c0_0, %c0_1] : memref<1x8x16xf32, #tpu.memory_space<vmem>>, vector<1x8x16xf32>
    %1 = vector.shape_cast %0 : vector<1x8x16xf32> to vector<8x16xf32>
    %c0_2 = arith.constant 0 : index
    %c0_3 = arith.constant 0 : index
    %c0_4 = arith.constant 0 : index
    %2 = vector.load %arg2[%c0_2, %c0_3, %c0_4] : memref<1x8x16xf32, #tpu.memory_space<vmem>>, vector<1x8x16xf32>
    %3 = vector.shape_cast %2 : vector<1x8x16xf32> to vector<8x16xf32>
    %c0_5 = arith.constant 0 : index
    %c0_6 = arith.constant 0 : index
    %4 = vector.load %arg3[%c0_5, %c0_6] : memref<16x64xf32, #tpu.memory_space<vmem>>, vector<16x64xf32>
    %cst = arith.constant dense<0.000000e+00> : vector<8x64xf32>
    %5 = tpu.matmul %1, %4, %cst {dimension_numbers = #tpu.dot_dimension_numbers<[1], [0], [0], [1], [0, 0, 1, 1], [], []>} : vector<8x16xf32>, vector<16x64xf32>, vector<8x64xf32> -> vector<8x64xf32>
    %c0_7 = arith.constant 0 : index
    %c0_8 = arith.constant 0 : index
    %6 = vector.load %arg4[%c0_7, %c0_8] : memref<16x64xf32, #tpu.memory_space<vmem>>, vector<16x64xf32>
    %cst_9 = arith.constant dense<0.000000e+00> : vector<8x64xf32>
    %7 = tpu.matmul %3, %6, %cst_9 {dimension_numbers = #tpu.dot_dimension_numbers<[1], [0], [0], [1], [0, 0, 1, 1], [], []>} : vector<8x16xf32>, vector<16x64xf32>, vector<8x64xf32> -> vector<8x64xf32>
    %8 = arith.addf %5, %7 : vector<8x64xf32>
    %c0_10 = arith.constant 0 : index
    %c0_11 = arith.constant 0 : index
    %9 = vector.load %arg8[%c0_10, %c0_11] : memref<12x128xf32, #tpu.memory_space<vmem>>, vector<1x64xf32>
    %c1 = arith.constant 1 : index
    %c0_12 = arith.constant 0 : index
    %10 = vector.load %arg8[%c1, %c0_12] : memref<12x128xf32, #tpu.memory_space<vmem>>, vector<1x64xf32>
    %c2 = arith.constant 2 : index
    %c0_13 = arith.constant 0 : index
    %11 = vector.load %arg8[%c2, %c0_13] : memref<12x128xf32, #tpu.memory_space<vmem>>, vector<1x64xf32>
    %12 = vector.broadcast %9 : vector<1x64xf32> to vector<8x64xf32>
    %13 = arith.addf %8, %12 : vector<8x64xf32>
    %cst_14 = arith.constant 5.000000e-01 : f32
    %14 = vector.broadcast %cst_14 : f32 to vector<8x64xf32>
    %15 = arith.mulf %14, %13 : vector<8x64xf32>
    %cst_15 = arith.constant 0.707106769 : f32
    %16 = vector.broadcast %cst_15 : f32 to vector<8x64xf32>
    %17 = arith.mulf %13, %16 : vector<8x64xf32>
    %18 = math.erf %17 : vector<8x64xf32>
    %cst_16 = arith.constant 1.000000e+00 : f32
    %19 = vector.broadcast %cst_16 : f32 to vector<8x64xf32>
    %20 = arith.addf %19, %18 : vector<8x64xf32>
    %21 = arith.mulf %15, %20 : vector<8x64xf32>
    %22 = vector.shape_cast %21 : vector<8x64xf32> to vector<1x8x64xf32>
    %cst_17 = arith.constant dense<0.000000e+00> : vector<1x64xf32>
    %23 = vector.multi_reduction <add>, %22, %cst_17 [1] : vector<1x8x64xf32> to vector<1x64xf32>
    %24 = vector.shape_cast %23 : vector<1x64xf32> to vector<1x1x64xf32>
    %25 = arith.mulf %22, %22 : vector<1x8x64xf32>
    %cst_18 = arith.constant dense<0.000000e+00> : vector<1x64xf32>
    %26 = vector.multi_reduction <add>, %25, %cst_18 [1] : vector<1x8x64xf32> to vector<1x64xf32>
    %27 = vector.shape_cast %26 : vector<1x64xf32> to vector<1x1x64xf32>
    %cst_19 = arith.constant 1.250000e-01 : f32
    %28 = vector.broadcast %cst_19 : f32 to vector<1x1x64xf32>
    %29 = arith.mulf %24, %28 : vector<1x1x64xf32>
    %cst_20 = arith.constant 1.250000e-01 : f32
    %30 = vector.broadcast %cst_20 : f32 to vector<1x1x64xf32>
    %31 = arith.mulf %27, %30 : vector<1x1x64xf32>
    %32 = arith.mulf %29, %29 : vector<1x1x64xf32>
    %33 = arith.subf %31, %32 : vector<1x1x64xf32>
    %cst_21 = arith.constant 0.000000e+00 : f32
    %34 = vector.broadcast %cst_21 : f32 to vector<1x1x64xf32>
    %35 = arith.maximumf %33, %34 : vector<1x1x64xf32>
    %36 = vector.shape_cast %10 : vector<1x64xf32> to vector<1x1x64xf32>
    %cst_22 = arith.constant 9.99999974E-6 : f32
    %37 = vector.broadcast %cst_22 : f32 to vector<1x1x64xf32>
    %38 = arith.addf %35, %37 : vector<1x1x64xf32>
    %39 = math.rsqrt %38 : vector<1x1x64xf32>
    %40 = arith.mulf %36, %39 : vector<1x1x64xf32>
    %41 = vector.shape_cast %11 : vector<1x64xf32> to vector<1x1x64xf32>
    %42 = arith.mulf %29, %40 : vector<1x1x64xf32>
    %43 = arith.subf %41, %42 : vector<1x1x64xf32>
    %44 = vector.broadcast %40 : vector<1x1x64xf32> to vector<1x8x64xf32>
    %45 = arith.mulf %22, %44 : vector<1x8x64xf32>
    %46 = vector.broadcast %43 : vector<1x1x64xf32> to vector<1x8x64xf32>
    %47 = arith.addf %45, %46 : vector<1x8x64xf32>
    %48 = vector.shape_cast %47 : vector<1x8x64xf32> to vector<8x64xf32>
    %c0_23 = arith.constant 0 : index
    %c0_24 = arith.constant 0 : index
    %49 = vector.load %arg5[%c0_23, %c0_24] : memref<64x128xf32, #tpu.memory_space<vmem>>, vector<64x128xf32>
    %cst_25 = arith.constant dense<0.000000e+00> : vector<8x128xf32>
    %50 = tpu.matmul %48, %49, %cst_25 {dimension_numbers = #tpu.dot_dimension_numbers<[1], [0], [0], [1], [0, 0, 1, 1], [], []>} : vector<8x64xf32>, vector<64x128xf32>, vector<8x128xf32> -> vector<8x128xf32>
    %c3 = arith.constant 3 : index
    %c0_26 = arith.constant 0 : index
    %51 = vector.load %arg8[%c3, %c0_26] : memref<12x128xf32, #tpu.memory_space<vmem>>, vector<1x128xf32>
    %c4 = arith.constant 4 : index
    %c0_27 = arith.constant 0 : index
    %52 = vector.load %arg8[%c4, %c0_27] : memref<12x128xf32, #tpu.memory_space<vmem>>, vector<1x128xf32>
    %c5 = arith.constant 5 : index
    %c0_28 = arith.constant 0 : index
    %53 = vector.load %arg8[%c5, %c0_28] : memref<12x128xf32, #tpu.memory_space<vmem>>, vector<1x128xf32>
    %54 = vector.broadcast %51 : vector<1x128xf32> to vector<8x128xf32>
    %55 = arith.addf %50, %54 : vector<8x128xf32>
    %cst_29 = arith.constant 5.000000e-01 : f32
    %56 = vector.broadcast %cst_29 : f32 to vector<8x128xf32>
    %57 = arith.mulf %56, %55 : vector<8x128xf32>
    %cst_30 = arith.constant 0.707106769 : f32
    %58 = vector.broadcast %cst_30 : f32 to vector<8x128xf32>
    %59 = arith.mulf %55, %58 : vector<8x128xf32>
    %60 = math.erf %59 : vector<8x128xf32>
    %cst_31 = arith.constant 1.000000e+00 : f32
    %61 = vector.broadcast %cst_31 : f32 to vector<8x128xf32>
    %62 = arith.addf %61, %60 : vector<8x128xf32>
    %63 = arith.mulf %57, %62 : vector<8x128xf32>
    %64 = vector.shape_cast %63 : vector<8x128xf32> to vector<1x8x128xf32>
    %cst_32 = arith.constant dense<0.000000e+00> : vector<1x128xf32>
    %65 = vector.multi_reduction <add>, %64, %cst_32 [1] : vector<1x8x128xf32> to vector<1x128xf32>
    %66 = vector.shape_cast %65 : vector<1x128xf32> to vector<1x1x128xf32>
    %67 = arith.mulf %64, %64 : vector<1x8x128xf32>
    %cst_33 = arith.constant dense<0.000000e+00> : vector<1x128xf32>
    %68 = vector.multi_reduction <add>, %67, %cst_33 [1] : vector<1x8x128xf32> to vector<1x128xf32>
    %69 = vector.shape_cast %68 : vector<1x128xf32> to vector<1x1x128xf32>
    %cst_34 = arith.constant 1.250000e-01 : f32
    %70 = vector.broadcast %cst_34 : f32 to vector<1x1x128xf32>
    %71 = arith.mulf %66, %70 : vector<1x1x128xf32>
    %cst_35 = arith.constant 1.250000e-01 : f32
    %72 = vector.broadcast %cst_35 : f32 to vector<1x1x128xf32>
    %73 = arith.mulf %69, %72 : vector<1x1x128xf32>
    %74 = arith.mulf %71, %71 : vector<1x1x128xf32>
    %75 = arith.subf %73, %74 : vector<1x1x128xf32>
    %cst_36 = arith.constant 0.000000e+00 : f32
    %76 = vector.broadcast %cst_36 : f32 to vector<1x1x128xf32>
    %77 = arith.maximumf %75, %76 : vector<1x1x128xf32>
    %78 = vector.shape_cast %52 : vector<1x128xf32> to vector<1x1x128xf32>
    %cst_37 = arith.constant 9.99999974E-6 : f32
    %79 = vector.broadcast %cst_37 : f32 to vector<1x1x128xf32>
    %80 = arith.addf %77, %79 : vector<1x1x128xf32>
    %81 = math.rsqrt %80 : vector<1x1x128xf32>
    %82 = arith.mulf %78, %81 : vector<1x1x128xf32>
    %83 = vector.shape_cast %53 : vector<1x128xf32> to vector<1x1x128xf32>
    %84 = arith.mulf %71, %82 : vector<1x1x128xf32>
    %85 = arith.subf %83, %84 : vector<1x1x128xf32>
    %86 = vector.broadcast %82 : vector<1x1x128xf32> to vector<1x8x128xf32>
    %87 = arith.mulf %64, %86 : vector<1x8x128xf32>
    %88 = vector.broadcast %85 : vector<1x1x128xf32> to vector<1x8x128xf32>
    %89 = arith.addf %87, %88 : vector<1x8x128xf32>
    %90 = vector.shape_cast %89 : vector<1x8x128xf32> to vector<8x128xf32>
    %c0_38 = arith.constant 0 : index
    %c0_39 = arith.constant 0 : index
    %91 = vector.load %arg6[%c0_38, %c0_39] : memref<128x64xf32, #tpu.memory_space<vmem>>, vector<128x64xf32>
    %cst_40 = arith.constant dense<0.000000e+00> : vector<8x64xf32>
    %92 = tpu.matmul %90, %91, %cst_40 {dimension_numbers = #tpu.dot_dimension_numbers<[1], [0], [0], [1], [0, 0, 1, 1], [], []>} : vector<8x128xf32>, vector<128x64xf32>, vector<8x64xf32> -> vector<8x64xf32>
    %c6 = arith.constant 6 : index
    %c0_41 = arith.constant 0 : index
    %93 = vector.load %arg8[%c6, %c0_41] : memref<12x128xf32, #tpu.memory_space<vmem>>, vector<1x64xf32>
    %c7 = arith.constant 7 : index
    %c0_42 = arith.constant 0 : index
    %94 = vector.load %arg8[%c7, %c0_42] : memref<12x128xf32, #tpu.memory_space<vmem>>, vector<1x64xf32>
    %c8 = arith.constant 8 : index
    %c0_43 = arith.constant 0 : index
    %95 = vector.load %arg8[%c8, %c0_43] : memref<12x128xf32, #tpu.memory_space<vmem>>, vector<1x64xf32>
    %96 = vector.broadcast %93 : vector<1x64xf32> to vector<8x64xf32>
    %97 = arith.addf %92, %96 : vector<8x64xf32>
    %cst_44 = arith.constant 5.000000e-01 : f32
    %98 = vector.broadcast %cst_44 : f32 to vector<8x64xf32>
    %99 = arith.mulf %98, %97 : vector<8x64xf32>
    %cst_45 = arith.constant 0.707106769 : f32
    %100 = vector.broadcast %cst_45 : f32 to vector<8x64xf32>
    %101 = arith.mulf %97, %100 : vector<8x64xf32>
    %102 = math.erf %101 : vector<8x64xf32>
    %cst_46 = arith.constant 1.000000e+00 : f32
    %103 = vector.broadcast %cst_46 : f32 to vector<8x64xf32>
    %104 = arith.addf %103, %102 : vector<8x64xf32>
    %105 = arith.mulf %99, %104 : vector<8x64xf32>
    %106 = vector.shape_cast %105 : vector<8x64xf32> to vector<1x8x64xf32>
    %cst_47 = arith.constant dense<0.000000e+00> : vector<1x64xf32>
    %107 = vector.multi_reduction <add>, %106, %cst_47 [1] : vector<1x8x64xf32> to vector<1x64xf32>
    %108 = vector.shape_cast %107 : vector<1x64xf32> to vector<1x1x64xf32>
    %109 = arith.mulf %106, %106 : vector<1x8x64xf32>
    %cst_48 = arith.constant dense<0.000000e+00> : vector<1x64xf32>
    %110 = vector.multi_reduction <add>, %109, %cst_48 [1] : vector<1x8x64xf32> to vector<1x64xf32>
    %111 = vector.shape_cast %110 : vector<1x64xf32> to vector<1x1x64xf32>
    %cst_49 = arith.constant 1.250000e-01 : f32
    %112 = vector.broadcast %cst_49 : f32 to vector<1x1x64xf32>
    %113 = arith.mulf %108, %112 : vector<1x1x64xf32>
    %cst_50 = arith.constant 1.250000e-01 : f32
    %114 = vector.broadcast %cst_50 : f32 to vector<1x1x64xf32>
    %115 = arith.mulf %111, %114 : vector<1x1x64xf32>
    %116 = arith.mulf %113, %113 : vector<1x1x64xf32>
    %117 = arith.subf %115, %116 : vector<1x1x64xf32>
    %cst_51 = arith.constant 0.000000e+00 : f32
    %118 = vector.broadcast %cst_51 : f32 to vector<1x1x64xf32>
    %119 = arith.maximumf %117, %118 : vector<1x1x64xf32>
    %120 = vector.shape_cast %94 : vector<1x64xf32> to vector<1x1x64xf32>
    %cst_52 = arith.constant 9.99999974E-6 : f32
    %121 = vector.broadcast %cst_52 : f32 to vector<1x1x64xf32>
    %122 = arith.addf %119, %121 : vector<1x1x64xf32>
    %123 = math.rsqrt %122 : vector<1x1x64xf32>
    %124 = arith.mulf %120, %123 : vector<1x1x64xf32>
    %125 = vector.shape_cast %95 : vector<1x64xf32> to vector<1x1x64xf32>
    %126 = arith.mulf %113, %124 : vector<1x1x64xf32>
    %127 = arith.subf %125, %126 : vector<1x1x64xf32>
    %128 = vector.broadcast %124 : vector<1x1x64xf32> to vector<1x8x64xf32>
    %129 = arith.mulf %106, %128 : vector<1x8x64xf32>
    %130 = vector.broadcast %127 : vector<1x1x64xf32> to vector<1x8x64xf32>
    %131 = arith.addf %129, %130 : vector<1x8x64xf32>
    %132 = vector.shape_cast %131 : vector<1x8x64xf32> to vector<8x64xf32>
    %c0_53 = arith.constant 0 : index
    %c0_54 = arith.constant 0 : index
    %133 = vector.load %arg7[%c0_53, %c0_54] : memref<64x32xf32, #tpu.memory_space<vmem>>, vector<64x32xf32>
    %cst_55 = arith.constant dense<0.000000e+00> : vector<8x32xf32>
    %134 = tpu.matmul %132, %133, %cst_55 {dimension_numbers = #tpu.dot_dimension_numbers<[1], [0], [0], [1], [0, 0, 1, 1], [], []>} : vector<8x64xf32>, vector<64x32xf32>, vector<8x32xf32> -> vector<8x32xf32>
    %c9 = arith.constant 9 : index
    %c0_56 = arith.constant 0 : index
    %135 = vector.load %arg8[%c9, %c0_56] : memref<12x128xf32, #tpu.memory_space<vmem>>, vector<1x32xf32>
    %c10 = arith.constant 10 : index
    %c0_57 = arith.constant 0 : index
    %136 = vector.load %arg8[%c10, %c0_57] : memref<12x128xf32, #tpu.memory_space<vmem>>, vector<1x32xf32>
    %c11 = arith.constant 11 : index
    %c0_58 = arith.constant 0 : index
    %137 = vector.load %arg8[%c11, %c0_58] : memref<12x128xf32, #tpu.memory_space<vmem>>, vector<1x32xf32>
    %138 = vector.broadcast %135 : vector<1x32xf32> to vector<8x32xf32>
    %139 = arith.addf %134, %138 : vector<8x32xf32>
    %cst_59 = arith.constant 5.000000e-01 : f32
    %140 = vector.broadcast %cst_59 : f32 to vector<8x32xf32>
    %141 = arith.mulf %140, %139 : vector<8x32xf32>
    %cst_60 = arith.constant 0.707106769 : f32
    %142 = vector.broadcast %cst_60 : f32 to vector<8x32xf32>
    %143 = arith.mulf %139, %142 : vector<8x32xf32>
    %144 = math.erf %143 : vector<8x32xf32>
    %cst_61 = arith.constant 1.000000e+00 : f32
    %145 = vector.broadcast %cst_61 : f32 to vector<8x32xf32>
    %146 = arith.addf %145, %144 : vector<8x32xf32>
    %147 = arith.mulf %141, %146 : vector<8x32xf32>
    %148 = vector.shape_cast %147 : vector<8x32xf32> to vector<1x8x32xf32>
    %cst_62 = arith.constant dense<0.000000e+00> : vector<1x32xf32>
    %149 = vector.multi_reduction <add>, %148, %cst_62 [1] : vector<1x8x32xf32> to vector<1x32xf32>
    %150 = vector.shape_cast %149 : vector<1x32xf32> to vector<1x1x32xf32>
    %151 = arith.mulf %148, %148 : vector<1x8x32xf32>
    %cst_63 = arith.constant dense<0.000000e+00> : vector<1x32xf32>
    %152 = vector.multi_reduction <add>, %151, %cst_63 [1] : vector<1x8x32xf32> to vector<1x32xf32>
    %153 = vector.shape_cast %152 : vector<1x32xf32> to vector<1x1x32xf32>
    %cst_64 = arith.constant 1.250000e-01 : f32
    %154 = vector.broadcast %cst_64 : f32 to vector<1x1x32xf32>
    %155 = arith.mulf %150, %154 : vector<1x1x32xf32>
    %cst_65 = arith.constant 1.250000e-01 : f32
    %156 = vector.broadcast %cst_65 : f32 to vector<1x1x32xf32>
    %157 = arith.mulf %153, %156 : vector<1x1x32xf32>
    %158 = arith.mulf %155, %155 : vector<1x1x32xf32>
    %159 = arith.subf %157, %158 : vector<1x1x32xf32>
    %cst_66 = arith.constant 0.000000e+00 : f32
    %160 = vector.broadcast %cst_66 : f32 to vector<1x1x32xf32>
    %161 = arith.maximumf %159, %160 : vector<1x1x32xf32>
    %162 = vector.shape_cast %136 : vector<1x32xf32> to vector<1x1x32xf32>
    %cst_67 = arith.constant 9.99999974E-6 : f32
    %163 = vector.broadcast %cst_67 : f32 to vector<1x1x32xf32>
    %164 = arith.addf %161, %163 : vector<1x1x32xf32>
    %165 = math.rsqrt %164 : vector<1x1x32xf32>
    %166 = arith.mulf %162, %165 : vector<1x1x32xf32>
    %167 = vector.shape_cast %137 : vector<1x32xf32> to vector<1x1x32xf32>
    %168 = arith.mulf %155, %166 : vector<1x1x32xf32>
    %169 = arith.subf %167, %168 : vector<1x1x32xf32>
    %170 = vector.broadcast %166 : vector<1x1x32xf32> to vector<1x8x32xf32>
    %171 = arith.mulf %148, %170 : vector<1x8x32xf32>
    %172 = vector.broadcast %169 : vector<1x1x32xf32> to vector<1x8x32xf32>
    %173 = arith.addf %171, %172 : vector<1x8x32xf32>
    %174 = vector.shape_cast %173 : vector<1x8x32xf32> to vector<8x32xf32>
    %175 = vector.shape_cast %174 : vector<8x32xf32> to vector<1x8x32xf32>
    %c0_68 = arith.constant 0 : index
    %c0_69 = arith.constant 0 : index
    %c0_70 = arith.constant 0 : index
    %176 = vector.load %arg9[%c0_68, %c0_69, %c0_70] : memref<1x8x32xf32, #tpu.memory_space<vmem>>, vector<1x8x32xf32>
    tpu.vector_store %arg9[%c0_68, %c0_69, %c0_70], %175 {strides = array<i32>} : memref<1x8x32xf32, #tpu.memory_space<vmem>>, vector<1x8x32xf32>,
    return
  }
  func.func @transform_0(%arg0: i32) -> (i32, i32, i32) {
    %c0_i32 = arith.constant 0 : i32
    %c0_i32_0 = arith.constant 0 : i32
    %c0_i32_1 = arith.constant 0 : i32
    return %arg0, %c0_i32, %c0_i32_0 : i32, i32, i32
  }
  func.func @transform_1(%arg0: i32) -> (i32, i32, i32) {
    %c0_i32 = arith.constant 0 : i32
    %c0_i32_0 = arith.constant 0 : i32
    %c0_i32_1 = arith.constant 0 : i32
    return %arg0, %c0_i32, %c0_i32_0 : i32, i32, i32
  }
  func.func @transform_2(%arg0: i32) -> (i32, i32) {
    %c0_i32 = arith.constant 0 : i32
    %c0_i32_0 = arith.constant 0 : i32
    %c0_i32_1 = arith.constant 0 : i32
    return %c0_i32, %c0_i32_0 : i32, i32
  }
  func.func @transform_3(%arg0: i32) -> (i32, i32) {
    %c0_i32 = arith.constant 0 : i32
    %c0_i32_0 = arith.constant 0 : i32
    %c0_i32_1 = arith.constant 0 : i32
    return %c0_i32, %c0_i32_0 : i32, i32
  }
  func.func @transform_4(%arg0: i32) -> (i32, i32) {
    %c0_i32 = arith.constant 0 : i32
    %c0_i32_0 = arith.constant 0 : i32
    %c0_i32_1 = arith.constant 0 : i32
    return %c0_i32, %c0_i32_0 : i32, i32
  }
  func.func @transform_5(%arg0: i32) -> (i32, i32) {
    %c0_i32 = arith.constant 0 : i32
    %c0_i32_0 = arith.constant 0 : i32
    %c0_i32_1 = arith.constant 0 : i32
    return %c0_i32, %c0_i32_0 : i32, i32
  }
  func.func @transform_6(%arg0: i32) -> (i32, i32) {
    %c0_i32 = arith.constant 0 : i32
    %c0_i32_0 = arith.constant 0 : i32
    %c0_i32_1 = arith.constant 0 : i32
    return %c0_i32, %c0_i32_0 : i32, i32
  }
  func.func @transform_7(%arg0: i32) -> (i32, i32) {
    %c0_i32 = arith.constant 0 : i32
    %c0_i32_0 = arith.constant 0 : i32
    %c0_i32_1 = arith.constant 0 : i32
    return %c0_i32, %c0_i32_0 : i32, i32
  }
  func.func @transform_8(%arg0: i32) -> (i32, i32, i32) {
    %c0_i32 = arith.constant 0 : i32
    %c0_i32_0 = arith.constant 0 : i32
    %c0_i32_1 = arith.constant 0 : i32
    return %arg0, %c0_i32, %c0_i32_0 : i32, i32, i32
  }
}

</mosaic_0001>

<llo_original>
// kernel: tpu_custom_call.1
$region0: #{tpu_custom_call.1}
  #allocation0 [shape = 'u32[]', space=smem, size = 0x4, offset = 0x4, fixed_abs, tag = 'smem constant byte address 0x4 - core index']
  #allocation1 [shape = 'u32[72,128]{1,0:T(1,128)}', space=vmem, size = 0x9000, scoped, tag = 'internal scratch']
  %s0 = inlined_call_operand.vmem [shape: f32[1,8,16], index: 0, kind: input, shape index: {}]
  %s1 = inlined_call_operand.vmem [shape: f32[1,8,16], index: 1, kind: input, shape index: {}]
  %s2 = inlined_call_operand.vmem [shape: f32[16,64], index: 2, kind: input, shape index: {}]
  %s3 = inlined_call_operand.vmem [shape: f32[16,64], index: 3, kind: input, shape index: {}]
  %s4 = inlined_call_operand.vmem [shape: f32[64,128], index: 4, kind: input, shape index: {}]
  %s5 = inlined_call_operand.vmem [shape: f32[128,64], index: 5, kind: input, shape index: {}]
  %s6 = inlined_call_operand.vmem [shape: f32[64,32], index: 6, kind: input, shape index: {}]
  %s7 = inlined_call_operand.vmem [shape: f32[12,128], index: 7, kind: input, shape index: {}]
  %s8 = inlined_call_operand.hbm [shape: f32[1,8,32], index: 8, kind: output, shape index: {}]
  %s9 = sld [smem:[#allocation0]]
  $region42: #{tpu_custom_call.1} parent=0
    _
  %s11 = ssub.s32 1, %s9
  %s12 = scalar_select 0, %s11, %s9
  $region1: #{tpu_custom_call.1} parent=0
    #allocation2 [shape = 'u8[4096]{0}', space=vmem, size = 0x1000, scoped, tag = 'output window, operand 0, single buffered']
    #allocation3 [shape = 's32[1]{0}', space=sflag, size = 0x4, scoped, tag = 'scoped memory for tpu_custom_call.1']
    %13 = vsyncpa [#allocation3], 0
    // Predicated region
    $region2: #{tpu_custom_call.1} parent=1 // pred_check
      _
    $region3: #{tpu_custom_call.1} parent=1 // pred_check_branch
      %15 = sbr.rel (0) target = $region5
    $region4: #{tpu_custom_call.1} parent=1 // pred_region
      _
    $region5: #{tpu_custom_call.1} parent=1 // pred_fallthru
      _
    // Predicated region
    $region6: #{tpu_custom_call.1} parent=1 // pred_check
      _
    $region7: #{tpu_custom_call.1} parent=1 // pred_check_branch
      %17 = sbr.rel (0) target = $region9
    $region8: #{tpu_custom_call.1} parent=1 // pred_region
      _
    $region9: #{tpu_custom_call.1} parent=1 // pred_fallthru
      _
    // Predicated region
    $region10: #{tpu_custom_call.1} parent=1 // pred_check
      _
    $region11: #{tpu_custom_call.1} parent=1 // pred_check_branch
      %19 = sbr.rel (0) target = $region13
    $region12: #{tpu_custom_call.1} parent=1 // pred_region
      _
    $region13: #{tpu_custom_call.1} parent=1 // pred_fallthru
      _
    // Predicated region
    $region14: #{tpu_custom_call.1} parent=1 // pred_check
      _
    $region15: #{tpu_custom_call.1} parent=1 // pred_check_branch
      %21 = sbr.rel (0) target = $region17
    $region16: #{tpu_custom_call.1} parent=1 // pred_region
      _
    $region17: #{tpu_custom_call.1} parent=1 // pred_fallthru
      _
    // Predicated region
    $region18: #{tpu_custom_call.1} parent=1 // pred_check
      _
    $region19: #{tpu_custom_call.1} parent=1 // pred_check_branch
      %23 = sbr.rel (0) target = $region21
    $region20: #{tpu_custom_call.1} parent=1 // pred_region
      _
    $region21: #{tpu_custom_call.1} parent=1 // pred_fallthru
      _
    // Predicated region
    $region22: #{tpu_custom_call.1} parent=1 // pred_check
      _
    $region23: #{tpu_custom_call.1} parent=1 // pred_check_branch
      %25 = sbr.rel (0) target = $region25
    $region24: #{tpu_custom_call.1} parent=1 // pred_region
      _
    $region25: #{tpu_custom_call.1} parent=1 // pred_fallthru
      _
    // Predicated region
    $region26: #{tpu_custom_call.1} parent=1 // pred_check
      _
    $region27: #{tpu_custom_call.1} parent=1 // pred_check_branch
      %27 = sbr.rel (0) target = $region29
    $region28: #{tpu_custom_call.1} parent=1 // pred_region
      _
    $region29: #{tpu_custom_call.1} parent=1 // pred_fallthru
      _
    // Predicated region
    $region30: #{tpu_custom_call.1} parent=1 // pred_check
      _
    $region31: #{tpu_custom_call.1} parent=1 // pred_check_branch
      %29 = sbr.rel (0) target = $region33
    $region32: #{tpu_custom_call.1} parent=1 // pred_region
      _
    $region33: #{tpu_custom_call.1} parent=1 // pred_fallthru
      _
    %v30 = vld [vmem:[%s0] sm:$0xff]
    %v31 = vld [vmem:[%s1] sm:$0xff]
    %v32 = vld [vmem:[%s2] sm:$0xff]
    %v33 = vld [vmem:[%s2 + $0x8] sm:$0xff]
    %v34 = vld [vmem:[%s3] sm:$0xff]
    %v35 = vld [vmem:[%s3 + $0x8] sm:$0xff]
    %vm36 = vcmask 130048
    %v38 = vsel %vm36, %v31, 0
    %40 = vmatpush.msra.mxu0 0.0
    %41 = vmatpush.msra.mxu0 0.0
    %42 = vmatpush.msra.mxu0 0.0
    %43 = vmatpush.msra.mxu0 0.0
    %44 = vmatpush.msra.mxu0 0.0
    %45 = vmatpush.msra.mxu0 0.0
    %46 = vmatpush.msra.mxu0 0.0
    %47 = vmatpush.msra.mxu0 0.0
    %48 = vmatpush.msra.mxu0 0.0
    %49 = vmatpush.msra.mxu0 0.0
    %50 = vmatpush.msra.mxu0 0.0
    %51 = vmatpush.msra.mxu0 0.0
    %52 = vmatpush.msra.mxu0 0.0
    %53 = vmatpush.msra.mxu0 0.0
    %54 = vmatpush.msra.mxu0 %v35
    %55 = vmatpush.msra.mxu0 %v34
    %56 = vmatmul.f32.gmra.mxu0 %v38
    %v57 = vpop.f32.mrf.mxu0
    %v58 = vadd.f32 0.0, %v57
    %59 = vdwg.mxu0
    %v61 = vsel %vm36, %v30, 0
    %63 = vmatpush.msra.mxu0 0.0
    %64 = vmatpush.msra.mxu0 0.0
    %65 = vmatpush.msra.mxu0 0.0
    %66 = vmatpush.msra.mxu0 0.0
    %67 = vmatpush.msra.mxu0 0.0
    %68 = vmatpush.msra.mxu0 0.0
    %69 = vmatpush.msra.mxu0 0.0
    %70 = vmatpush.msra.mxu0 0.0
    %71 = vmatpush.msra.mxu0 0.0
    %72 = vmatpush.msra.mxu0 0.0
    %73 = vmatpush.msra.mxu0 0.0
    %74 = vmatpush.msra.mxu0 0.0
    %75 = vmatpush.msra.mxu0 0.0
    %76 = vmatpush.msra.mxu0 0.0
    %77 = vmatpush.msra.mxu0 %v33
    %78 = vmatpush.msra.mxu0 %v32
    %79 = vmatmul.f32.gmra.mxu0 %v61
    %v80 = vpop.f32.mrf.mxu0
    %v81 = vadd.f32 %v58, %v80
    %82 = vdwg.mxu0
    %v83 = vld [vmem:[%s7] sm:$0x1]
    %v84 = vld [vmem:[%s7 + $0x1] sm:$0x1]
    %v85 = vld [vmem:[%s7 + $0x2] sm:$0x1]
    %v86 = vperm.slane %v83, 0
    %v87 = vadd.f32 %v81, %v86
    %v88 = vmul.f32 %v87, 0.5
    %v89 = vmul.f32 %v87, 0.70710677
    %v90 = vmul.f32 %v89, %v89
    %v91 = vmin.f32 16.0, %v90
    %v92 = vmul.f32 %v91, 2.1237322e-06
    %v93 = vadd.f32 %v92, 0.00028619796
    %v94 = vmul.f32 %v91, %v93
    %v95 = vadd.f32 %v94, 0.0036580483
    %v96 = vmul.f32 %v91, %v95
    %v97 = vadd.f32 %v96, 0.05243302
    %v98 = vmul.f32 %v91, %v97
    %v99 = vadd.f32 %v98, 0.18741608
    %v100 = vmul.f32 %v91, %v99
    %v101 = vadd.f32 %v100, 1.1283791
    %v102 = vmul.f32 %v89, %v101
    %v103 = vmul.f32 %v91, 3.8918573e-05
    %v104 = vadd.f32 %v103, 0.001143296
    %v105 = vmul.f32 %v91, %v104
    %v106 = vadd.f32 %v105, 0.014752088
    %v107 = vmul.f32 %v91, %v106
    %v108 = vadd.f32 %v107, 0.112945676
    %v109 = vmul.f32 %v91, %v108
    %v110 = vadd.f32 %v109, 0.4994258
    %v111 = vmul.f32 %v91, %v110
    %v112 = vadd.f32 %v111, 1.0
    %v113 = vrcp.pop %v112
    %v114 = vmul.f32 %v112, %v113
    %v115 = vsub.f32 1.0, %v114
    %v116 = vmul.f32 %v113, %v115
    %v117 = vadd.f32 %v113, %v116
    %vm118 = vweird.f32 %v112
    %vm119 = vweird.f32 %v113
    %vm120 = vmor %vm118, %vm119
    %v121 = vsel %vm120, %v113, %v117
    %v122 = vand.u32 2147483647, %v112
    %vm123 = vcmp.eq.f32.partialorder %v122, 8.507059e+37
    %v124 = vand.u32 %v112, 2147483648
    %v125 = vor.u32 1.1754944e-38, %v124
    %v126 = vsel %vm123, %v125, %v121
    %v127 = vmul.f32 %v102, %v126
    %v128 = vmin.f32 %v127, 1.0
    %v129 = vmax.f32 %v128, -1.0
    %v130 = vadd.f32 %v129, 1.0
    %v131 = vmul.f32 %v88, %v130
    %vm132 = vcmask 523264
    %v133 = vsel %vm132, %v131, 0.0
    %v134 = vrot.slane %v133, 4
    %v135 = vadd.f32 %v133, %v134
    %v136 = vrot.slane %v135, 2
    %v137 = vadd.f32 %v135, %v136
    %v138 = vrot.slane %v137, 1
    %v139 = vadd.f32 %v137, %v138
    %v140 = vmul.f32 %v131, %v131
    %v141 = vsel %vm132, %v140, 0.0
    %v142 = vrot.slane %v141, 4
    %v143 = vadd.f32 %v141, %v142
    %v144 = vrot.slane %v143, 2
    %v145 = vadd.f32 %v143, %v144
    %v146 = vrot.slane %v145, 1
    %v147 = vadd.f32 %v145, %v146
    %v148 = vmul.f32 %v139, 0.125
    %v149 = vmul.f32 %v147, 0.125
    %v150 = vmul.f32 %v148, %v148
    %v151 = vsub.f32 %v149, %v150
    %v152 = vmax.f32 %v151, 0.0
    %v153 = vadd.f32 %v152, 1e-05
    %v154 = vrsqrt.pop %v153
    %v155 = vmul.f32 %v154, %v153
    %v156 = vmul.f32 %v155, %v154
    %v157 = vmul.f32 0.5, %v156
    %v158 = vsub.f32 1.5, %v157
    %v159 = vmul.f32 %v154, %v158
    %vm160 = vweird.f32 %v153
    %vm161 = vweird.f32 %v154
    %vm162 = vmor %vm160, %vm161
    %v163 = vsel %vm162, %v154, %v159
    %v164 = vmul.f32 %v84, %v163
    %v165 = vmul.f32 %v148, %v164
    %v166 = vsub.f32 %v85, %v165
    %v167 = vperm.slane %v164, 0
    %v168 = vmul.f32 %v131, %v167
    %v169 = vperm.slane %v166, 0
    %v170 = vadd.f32 %v168, %v169
    %v171 = vld [vmem:[%s4] sm:$0xff]
    %v172 = vld [vmem:[%s4 + $0x8] sm:$0xff]
    %v173 = vld [vmem:[%s4 + $0x10] sm:$0xff]
    %v174 = vld [vmem:[%s4 + $0x18] sm:$0xff]
    %v175 = vld [vmem:[%s4 + $0x20] sm:$0xff]
    %v176 = vld [vmem:[%s4 + $0x28] sm:$0xff]
    %v177 = vld [vmem:[%s4 + $0x30] sm:$0xff]
    %v178 = vld [vmem:[%s4 + $0x38] sm:$0xff]
    %v179 = vld [vmem:[%s7 + $0x3] sm:$0x1]
    %v180 = vld [vmem:[%s7 + $0x4] sm:$0x1]
    %v181 = vld [vmem:[%s7 + $0x5] sm:$0x1]
    %v182 = vperm.slane %v179, 0
    %v184 = vsel %vm132, %v170, 0
    %186 = vmatpush.msra.mxu0 0.0
    %187 = vmatpush.msra.mxu0 0.0
    %188 = vmatpush.msra.mxu0 0.0
    %189 = vmatpush.msra.mxu0 0.0
    %190 = vmatpush.msra.mxu0 0.0
    %191 = vmatpush.msra.mxu0 0.0
    %192 = vmatpush.msra.mxu0 0.0
    %193 = vmatpush.msra.mxu0 0.0
    %194 = vmatpush.msra.mxu0 %v178
    %195 = vmatpush.msra.mxu0 %v177
    %196 = vmatpush.msra.mxu0 %v176
    %197 = vmatpush.msra.mxu0 %v175
    %198 = vmatpush.msra.mxu0 %v174
    %199 = vmatpush.msra.mxu0 %v173
    %200 = vmatpush.msra.mxu0 %v172
    %201 = vmatpush.msra.mxu0 %v171
    %202 = vmatmul.f32.gmra.mxu0 %v184
    %v203 = vpop.f32.mrf.mxu0
    %v204 = vadd.f32 %v182, %v203
    %205 = vdwg.mxu0
    %v206 = vmul.f32 %v204, 0.5
    %v207 = vmul.f32 %v204, 0.70710677
    %v208 = vmul.f32 %v207, %v207
    %v209 = vmin.f32 16.0, %v208
    %v210 = vmul.f32 %v209, 2.1237322e-06
    %v211 = vadd.f32 %v210, 0.00028619796
    %v212 = vmul.f32 %v209, %v211
    %v213 = vadd.f32 %v212, 0.0036580483
    %v214 = vmul.f32 %v209, %v213
    %v215 = vadd.f32 %v214, 0.05243302
    %v216 = vmul.f32 %v209, %v215
    %v217 = vadd.f32 %v216, 0.18741608
    %v218 = vmul.f32 %v209, %v217
    %v219 = vadd.f32 %v218, 1.1283791
    %v220 = vmul.f32 %v207, %v219
    %v221 = vmul.f32 %v209, 3.8918573e-05
    %v222 = vadd.f32 %v221, 0.001143296
    %v223 = vmul.f32 %v209, %v222
    %v224 = vadd.f32 %v223, 0.014752088
    %v225 = vmul.f32 %v209, %v224
    %v226 = vadd.f32 %v225, 0.112945676
    %v227 = vmul.f32 %v209, %v226
    %v228 = vadd.f32 %v227, 0.4994258
    %v229 = vmul.f32 %v209, %v228
    %v230 = vadd.f32 %v229, 1.0
    %v231 = vrcp.pop %v230
    %v232 = vmul.f32 %v230, %v231
    %v233 = vsub.f32 1.0, %v232
    %v234 = vmul.f32 %v231, %v233
    %v235 = vadd.f32 %v231, %v234
    %vm236 = vweird.f32 %v230
    %vm237 = vweird.f32 %v231
    %vm238 = vmor %vm236, %vm237
    %v239 = vsel %vm238, %v231, %v235
    %v240 = vand.u32 2147483647, %v230
    %vm241 = vcmp.eq.f32.partialorder %v240, 8.507059e+37
    %v242 = vand.u32 %v230, 2147483648
    %v243 = vor.u32 1.1754944e-38, %v242
    %v244 = vsel %vm241, %v243, %v239
    %v245 = vmul.f32 %v220, %v244
    %v246 = vmin.f32 %v245, 1.0
    %v247 = vmax.f32 %v246, -1.0
    %v248 = vadd.f32 %v247, 1.0
    %v249 = vmul.f32 %v206, %v248
    %v250 = vrot.slane %v249, 4
    %v251 = vadd.f32 %v249, %v250
    %v252 = vrot.slane %v251, 2
    %v253 = vadd.f32 %v251, %v252
    %v254 = vrot.slane %v253, 1
    %v255 = vadd.f32 %v253, %v254
    %v256 = vmul.f32 %v249, %v249
    %v257 = vrot.slane %v256, 4
    %v258 = vadd.f32 %v256, %v257
    %v259 = vrot.slane %v258, 2
    %v260 = vadd.f32 %v258, %v259
    %v261 = vrot.slane %v260, 1
    %v262 = vadd.f32 %v260, %v261
    %v263 = vmul.f32 %v255, 0.125
    %v264 = vmul.f32 %v262, 0.125
    %v265 = vmul.f32 %v263, %v263
    %v266 = vsub.f32 %v264, %v265
    %v267 = vmax.f32 %v266, 0.0
    %v268 = vadd.f32 %v267, 1e-05
    %v269 = vrsqrt.pop %v268
    %v270 = vmul.f32 %v269, %v268
    %v271 = vmul.f32 %v270, %v269
    %v272 = vmul.f32 0.5, %v271
    %v273 = vsub.f32 1.5, %v272
    %v274 = vmul.f32 %v269, %v273
    %vm275 = vweird.f32 %v268
    %vm276 = vweird.f32 %v269
    %vm277 = vmor %vm275, %vm276
    %v278 = vsel %vm277, %v269, %v274
    %v279 = vmul.f32 %v180, %v278
    %v280 = vmul.f32 %v263, %v279
    %v281 = vsub.f32 %v181, %v280
    %v282 = vperm.slane %v279, 0
    %v283 = vmul.f32 %v249, %v282
    %v284 = vperm.slane %v281, 0
    %v285 = vadd.f32 %v283, %v284
    %v286 = vld [vmem:[%s5] sm:$0xff]
    %v287 = vld [vmem:[%s5 + $0x8] sm:$0xff]
    %v288 = vld [vmem:[%s5 + $0x10] sm:$0xff]
    %v289 = vld [vmem:[%s5 + $0x18] sm:$0xff]
    %v290 = vld [vmem:[%s5 + $0x20] sm:$0xff]
    %v291 = vld [vmem:[%s5 + $0x28] sm:$0xff]
    %v292 = vld [vmem:[%s5 + $0x30] sm:$0xff]
    %v293 = vld [vmem:[%s5 + $0x38] sm:$0xff]
    %v294 = vld [vmem:[%s5 + $0x40] sm:$0xff]
    %v295 = vld [vmem:[%s5 + $0x48] sm:$0xff]
    %v296 = vld [vmem:[%s5 + $0x50] sm:$0xff]
    %v297 = vld [vmem:[%s5 + $0x58] sm:$0xff]
    %v298 = vld [vmem:[%s5 + $0x60] sm:$0xff]
    %v299 = vld [vmem:[%s5 + $0x68] sm:$0xff]
    %v300 = vld [vmem:[%s5 + $0x70] sm:$0xff]
    %v301 = vld [vmem:[%s5 + $0x78] sm:$0xff]
    %v302 = vld [vmem:[%s7 + $0x6] sm:$0x1]
    %v303 = vld [vmem:[%s7 + $0x7] sm:$0x1]
    %v304 = vld [vmem:[%s7 + $0x8] sm:$0x1]
    %v305 = vperm.slane %v302, 0
    %306 = vmatpush.msra.mxu0 %v301
    %307 = vmatpush.msra.mxu0 %v300
    %308 = vmatpush.msra.mxu0 %v299
    %309 = vmatpush.msra.mxu0 %v298
    %310 = vmatpush.msra.mxu0 %v297
    %311 = vmatpush.msra.mxu0 %v296
    %312 = vmatpush.msra.mxu0 %v295
    %313 = vmatpush.msra.mxu0 %v294
    %314 = vmatpush.msra.mxu0 %v293
    %315 = vmatpush.msra.mxu0 %v292
    %316 = vmatpush.msra.mxu0 %v291
    %317 = vmatpush.msra.mxu0 %v290
    %318 = vmatpush.msra.mxu0 %v289
    %319 = vmatpush.msra.mxu0 %v288
    %320 = vmatpush.msra.mxu0 %v287
    %321 = vmatpush.msra.mxu0 %v286
    %322 = vmatmul.f32.gmra.mxu0 %v285
    %v323 = vpop.f32.mrf.mxu0
    %v324 = vadd.f32 %v305, %v323
    %325 = vdwg.mxu0
    %v326 = vmul.f32 %v324, 0.5
    %v327 = vmul.f32 %v324, 0.70710677
    %v328 = vmul.f32 %v327, %v327
    %v329 = vmin.f32 16.0, %v328
    %v330 = vmul.f32 %v329, 2.1237322e-06
    %v331 = vadd.f32 %v330, 0.00028619796
    %v332 = vmul.f32 %v329, %v331
    %v333 = vadd.f32 %v332, 0.0036580483
    %v334 = vmul.f32 %v329, %v333
    %v335 = vadd.f32 %v334, 0.05243302
    %v336 = vmul.f32 %v329, %v335
    %v337 = vadd.f32 %v336, 0.18741608
    %v338 = vmul.f32 %v329, %v337
    %v339 = vadd.f32 %v338, 1.1283791
    %v340 = vmul.f32 %v327, %v339
    %v341 = vmul.f32 %v329, 3.8918573e-05
    %v342 = vadd.f32 %v341, 0.001143296
    %v343 = vmul.f32 %v329, %v342
    %v344 = vadd.f32 %v343, 0.014752088
    %v345 = vmul.f32 %v329, %v344
    %v346 = vadd.f32 %v345, 0.112945676
    %v347 = vmul.f32 %v329, %v346
    %v348 = vadd.f32 %v347, 0.4994258
    %v349 = vmul.f32 %v329, %v348
    %v350 = vadd.f32 %v349, 1.0
    %v351 = vrcp.pop %v350
    %v352 = vmul.f32 %v350, %v351
    %v353 = vsub.f32 1.0, %v352
    %v354 = vmul.f32 %v351, %v353
    %v355 = vadd.f32 %v351, %v354
    %vm356 = vweird.f32 %v350
    %vm357 = vweird.f32 %v351
    %vm358 = vmor %vm356, %vm357
    %v359 = vsel %vm358, %v351, %v355
    %v360 = vand.u32 2147483647, %v350
    %vm361 = vcmp.eq.f32.partialorder %v360, 8.507059e+37
    %v362 = vand.u32 %v350, 2147483648
    %v363 = vor.u32 1.1754944e-38, %v362
    %v364 = vsel %vm361, %v363, %v359
    %v365 = vmul.f32 %v340, %v364
    %v366 = vmin.f32 %v365, 1.0
    %v367 = vmax.f32 %v366, -1.0
    %v368 = vadd.f32 %v367, 1.0
    %v369 = vmul.f32 %v326, %v368
    %v370 = vsel %vm132, %v369, 0.0
    %v371 = vrot.slane %v370, 4
    %v372 = vadd.f32 %v370, %v371
    %v373 = vrot.slane %v372, 2
    %v374 = vadd.f32 %v372, %v373
    %v375 = vrot.slane %v374, 1
    %v376 = vadd.f32 %v374, %v375
    %v377 = vmul.f32 %v369, %v369
    %v378 = vsel %vm132, %v377, 0.0
    %v379 = vrot.slane %v378, 4
    %v380 = vadd.f32 %v378, %v379
    %v381 = vrot.slane %v380, 2
    %v382 = vadd.f32 %v380, %v381
    %v383 = vrot.slane %v382, 1
    %v384 = vadd.f32 %v382, %v383
    %v385 = vmul.f32 %v376, 0.125
    %v386 = vmul.f32 %v384, 0.125
    %v387 = vmul.f32 %v385, %v385
    %v388 = vsub.f32 %v386, %v387
    %v389 = vmax.f32 %v388, 0.0
    %v390 = vadd.f32 %v389, 1e-05
    %v391 = vrsqrt.pop %v390
    %v392 = vmul.f32 %v391, %v390
    %v393 = vmul.f32 %v392, %v391
    %v394 = vmul.f32 0.5, %v393
    %v395 = vsub.f32 1.5, %v394
    %v396 = vmul.f32 %v391, %v395
    %vm397 = vweird.f32 %v390
    %vm398 = vweird.f32 %v391
    %vm399 = vmor %vm397, %vm398
    %v400 = vsel %vm399, %v391, %v396
    %v401 = vmul.f32 %v303, %v400
    %v402 = vmul.f32 %v385, %v401
    %v403 = vsub.f32 %v304, %v402
    %v404 = vperm.slane %v401, 0
    %v405 = vmul.f32 %v369, %v404
    %v406 = vperm.slane %v403, 0
    %v407 = vadd.f32 %v405, %v406
    %v408 = vld [vmem:[%s6] sm:$0xff]
    %v409 = vld [vmem:[%s6 + $0x8] sm:$0xff]
    %v410 = vld [vmem:[%s6 + $0x10] sm:$0xff]
    %v411 = vld [vmem:[%s6 + $0x18] sm:$0xff]
    %v412 = vld [vmem:[%s6 + $0x20] sm:$0xff]
    %v413 = vld [vmem:[%s6 + $0x28] sm:$0xff]
    %v414 = vld [vmem:[%s6 + $0x30] sm:$0xff]
    %v415 = vld [vmem:[%s6 + $0x38] sm:$0xff]
    %v416 = vld [vmem:[%s7 + $0x9] sm:$0x1]
    %v417 = vld [vmem:[%s7 + $0xa] sm:$0x1]
    %v418 = vld [vmem:[%s7 + $0xb] sm:$0x1]
    %v419 = vperm.slane %v416, 0
    %v421 = vsel %vm132, %v407, 0
    %423 = vmatpush.msra.mxu0 0.0
    %424 = vmatpush.msra.mxu0 0.0
    %425 = vmatpush.msra.mxu0 0.0
    %426 = vmatpush.msra.mxu0 0.0
    %427 = vmatpush.msra.mxu0 0.0
    %428 = vmatpush.msra.mxu0 0.0
    %429 = vmatpush.msra.mxu0 0.0
    %430 = vmatpush.msra.mxu0 0.0
    %431 = vmatpush.msra.mxu0 %v415
    %432 = vmatpush.msra.mxu0 %v414
    %433 = vmatpush.msra.mxu0 %v413
    %434 = vmatpush.msra.mxu0 %v412
    %435 = vmatpush.msra.mxu0 %v411
    %436 = vmatpush.msra.mxu0 %v410
    %437 = vmatpush.msra.mxu0 %v409
    %438 = vmatpush.msra.mxu0 %v408
    %439 = vmatmul.f32.gmra.mxu0 %v421
    %v440 = vpop.f32.mrf.mxu0
    %v441 = vadd.f32 %v419, %v440
    %442 = vdwg.mxu0
    %v443 = vmul.f32 %v441, 0.5
    %v444 = vmul.f32 %v441, 0.70710677
    %v445 = vmul.f32 %v444, %v444
    %v446 = vmin.f32 16.0, %v445
    %v447 = vmul.f32 %v446, 2.1237322e-06
    %v448 = vadd.f32 %v447, 0.00028619796
    %v449 = vmul.f32 %v446, %v448
    %v450 = vadd.f32 %v449, 0.0036580483
    %v451 = vmul.f32 %v446, %v450
    %v452 = vadd.f32 %v451, 0.05243302
    %v453 = vmul.f32 %v446, %v452
    %v454 = vadd.f32 %v453, 0.18741608
    %v455 = vmul.f32 %v446, %v454
    %v456 = vadd.f32 %v455, 1.1283791
    %v457 = vmul.f32 %v444, %v456
    %v458 = vmul.f32 %v446, 3.8918573e-05
    %v459 = vadd.f32 %v458, 0.001143296
    %v460 = vmul.f32 %v446, %v459
    %v461 = vadd.f32 %v460, 0.014752088
    %v462 = vmul.f32 %v446, %v461
    %v463 = vadd.f32 %v462, 0.112945676
    %v464 = vmul.f32 %v446, %v463
    %v465 = vadd.f32 %v464, 0.4994258
    %v466 = vmul.f32 %v446, %v465
    %v467 = vadd.f32 %v466, 1.0
    %v468 = vrcp.pop %v467
    %v469 = vmul.f32 %v467, %v468
    %v470 = vsub.f32 1.0, %v469
    %v471 = vmul.f32 %v468, %v470
    %v472 = vadd.f32 %v468, %v471
    %vm473 = vweird.f32 %v467
    %vm474 = vweird.f32 %v468
    %vm475 = vmor %vm473, %vm474
    %v476 = vsel %vm475, %v468, %v472
    %v477 = vand.u32 2147483647, %v467
    %vm478 = vcmp.eq.f32.partialorder %v477, 8.507059e+37
    %v479 = vand.u32 %v467, 2147483648
    %v480 = vor.u32 1.1754944e-38, %v479
    %v481 = vsel %vm478, %v480, %v476
    %v482 = vmul.f32 %v457, %v481
    %v483 = vmin.f32 %v482, 1.0
    %v484 = vmax.f32 %v483, -1.0
    %v485 = vadd.f32 %v484, 1.0
    %v486 = vmul.f32 %v443, %v485
    %vm487 = vcmask 261120
    %v488 = vsel %vm487, %v486, 0.0
    %v489 = vrot.slane %v488, 4
    %v490 = vadd.f32 %v488, %v489
    %v491 = vrot.slane %v490, 2
    %v492 = vadd.f32 %v490, %v491
    %v493 = vrot.slane %v492, 1
    %v494 = vadd.f32 %v492, %v493
    %v495 = vmul.f32 %v486, %v486
    %v496 = vsel %vm487, %v495, 0.0
    %v497 = vrot.slane %v496, 4
    %v498 = vadd.f32 %v496, %v497
    %v499 = vrot.slane %v498, 2
    %v500 = vadd.f32 %v498, %v499
    %v501 = vrot.slane %v500, 1
    %v502 = vadd.f32 %v500, %v501
    %v503 = vmul.f32 %v494, 0.125
    %v504 = vmul.f32 %v502, 0.125
    %v505 = vmul.f32 %v503, %v503
    %v506 = vsub.f32 %v504, %v505
    %v507 = vmax.f32 %v506, 0.0
    %v508 = vadd.f32 %v507, 1e-05
    %v509 = vrsqrt.pop %v508
    %v510 = vmul.f32 %v509, %v508
    %v511 = vmul.f32 %v510, %v509
    %v512 = vmul.f32 0.5, %v511
    %v513 = vsub.f32 1.5, %v512
    %v514 = vmul.f32 %v509, %v513
    %vm515 = vweird.f32 %v508
    %vm516 = vweird.f32 %v509
    %vm517 = vmor %vm515, %vm516
    %v518 = vsel %vm517, %v509, %v514
    %v519 = vmul.f32 %v417, %v518
    %v520 = vmul.f32 %v503, %v519
    %v521 = vsub.f32 %v418, %v520
    %v522 = vperm.slane %v519, 0
    %v523 = vmul.f32 %v486, %v522
    %v524 = vperm.slane %v521, 0
    %v525 = vadd.f32 %v523, %v524
    %526 = vst.msk [vmem:[#allocation2] sm:$0xff] %vm487, %v525
    // Predicated region
    $region34: #{tpu_custom_call.1} parent=1 // pred_check
      _
    $region35: #{tpu_custom_call.1} parent=1 // pred_check_branch
      %528 = sbr.rel (0) target = $region37
    $region36: #{tpu_custom_call.1} parent=1 // pred_region
      %530 = vsyncadd [#allocation3], 0
      %s532 = sshll.u32 [#allocation2], 4
      %s533 = int_to_ptr.vmem [resolvable:$true] %s532
      %s534 = sshll.u32 %s8, 4
      %s535 = int_to_ptr.hbm [resolvable:$true] %s534
      %537 = dma.vmem_to_hbm [thread:$0]  %s533, 128, %s535, [#allocation3]
    $region37: #{tpu_custom_call.1} parent=1 // pred_fallthru
      _
    // Predicated region
    $region38: #{tpu_custom_call.1} parent=1 // pred_check
      _
    $region39: #{tpu_custom_call.1} parent=1 // pred_check_branch
      %539 = sbr.rel (0) target = $region41
    $region40: #{tpu_custom_call.1} parent=1 // pred_region
      %541 = dma.done [#allocation3], 128
    $region41: #{tpu_custom_call.1} parent=1 // pred_fallthru
      _
    %542 = vsyncpa [#allocation3], 1

// kernel: tpu_custom_call.1
$region0: #{tpu_custom_call.1}
  #allocation0 [shape = 'u32[]', space=smem, size = 0x4, offset = 0x4, fixed_abs, tag = 'smem constant byte address 0x4 - core index']
  #allocation1 [shape = 'u32[72,128]{1,0:T(1,128)}', space=vmem, size = 0x9000, scoped, tag = 'internal scratch']
  %s0 = inlined_call_operand.vmem [shape: f32[1,8,16], index: 0, kind: input, shape index: {}]
  %s1 = inlined_call_operand.vmem [shape: f32[1,8,16], index: 1, kind: input, shape index: {}]
  %s2 = inlined_call_operand.vmem [shape: f32[16,64], index: 2, kind: input, shape index: {}]
  %s3 = inlined_call_operand.vmem [shape: f32[16,64], index: 3, kind: input, shape index: {}]
  %s4 = inlined_call_operand.vmem [shape: f32[64,128], index: 4, kind: input, shape index: {}]
  %s5 = inlined_call_operand.vmem [shape: f32[128,64], index: 5, kind: input, shape index: {}]
  %s6 = inlined_call_operand.vmem [shape: f32[64,32], index: 6, kind: input, shape index: {}]
  %s7 = inlined_call_operand.vmem [shape: f32[12,128], index: 7, kind: input, shape index: {}]
  %s8 = inlined_call_operand.hbm [shape: f32[1,8,32], index: 8, kind: output, shape index: {}]
  %s9 = sld [smem:[#allocation0]]
  $region42: #{tpu_custom_call.1} parent=0
    _
  %s11 = ssub.s32 1, %s9
  %s12 = scalar_select 0, %s11, %s9
  $region1: #{tpu_custom_call.1} parent=0
    #allocation2 [shape = 'u8[4096]{0}', space=vmem, size = 0x1000, scoped, tag = 'output window, operand 0, single buffered']
    #allocation3 [shape = 's32[1]{0}', space=sflag, size = 0x4, scoped, tag = 'scoped memory for tpu_custom_call.1']
    %13 = vsyncpa [#allocation3], 0
    // Predicated region
    $region2: #{tpu_custom_call.1} parent=1 // pred_check
      _
    $region3: #{tpu_custom_call.1} parent=1 // pred_check_branch
      %15 = sbr.rel (0) target = $region5
    $region4: #{tpu_custom_call.1} parent=1 // pred_region
      _
    $region5: #{tpu_custom_call.1} parent=1 // pred_fallthru
      _
    // Predicated region
    $region6: #{tpu_custom_call.1} parent=1 // pred_check
      _
    $region7: #{tpu_custom_call.1} parent=1 // pred_check_branch
      %17 = sbr.rel (0) target = $region9
    $region8: #{tpu_custom_call.1} parent=1 // pred_region
      _
    $region9: #{tpu_custom_call.1} parent=1 // pred_fallthru
      _
    // Predicated region
    $region10: #{tpu_custom_call.1} parent=1 // pred_check
      _
    $region11: #{tpu_custom_call.1} parent=1 // pred_check_branch
      %19 = sbr.rel (0) target = $region13
    $region12: #{tpu_custom_call.1} parent=1 // pred_region
      _
    $region13: #{tpu_custom_call.1} parent=1 // pred_fallthru
      _
    // Predicated region
    $region14: #{tpu_custom_call.1} parent=1 // pred_check
      _
    $region15: #{tpu_custom_call.1} parent=1 // pred_check_branch
      %21 = sbr.rel (0) target = $region17
    $region16: #{tpu_custom_call.1} parent=1 // pred_region
      _
    $region17: #{tpu_custom_call.1} parent=1 // pred_fallthru
      _
    // Predicated region
    $region18: #{tpu_custom_call.1} parent=1 // pred_check
      _
    $region19: #{tpu_custom_call.1} parent=1 // pred_check_branch
      %23 = sbr.rel (0) target = $region21
    $region20: #{tpu_custom_call.1} parent=1 // pred_region
      _
    $region21: #{tpu_custom_call.1} parent=1 // pred_fallthru
      _
    // Predicated region
    $region22: #{tpu_custom_call.1} parent=1 // pred_check
      _
    $region23: #{tpu_custom_call.1} parent=1 // pred_check_branch
      %25 = sbr.rel (0) target = $region25
    $region24: #{tpu_custom_call.1} parent=1 // pred_region
      _
    $region25: #{tpu_custom_call.1} parent=1 // pred_fallthru
      _
    // Predicated region
    $region26: #{tpu_custom_call.1} parent=1 // pred_check
      _
    $region27: #{tpu_custom_call.1} parent=1 // pred_check_branch
      %27 = sbr.rel (0) target = $region29
    $region28: #{tpu_custom_call.1} parent=1 // pred_region
      _
    $region29: #{tpu_custom_call.1} parent=1 // pred_fallthru
      _
    // Predicated region
    $region30: #{tpu_custom_call.1} parent=1 // pred_check
      _
    $region31: #{tpu_custom_call.1} parent=1 // pred_check_branch
      %29 = sbr.rel (0) target = $region33
    $region32: #{tpu_custom_call.1} parent=1 // pred_region
      _
    $region33: #{tpu_custom_call.1} parent=1 // pred_fallthru
      _
    %v30 = vld [vmem:[%s0] sm:$0xff]
    %v31 = vld [vmem:[%s1] sm:$0xff]
    %v32 = vld [vmem:[%s2] sm:$0xff]
    %v33 = vld [vmem:[%s2 + $0x8] sm:$0xff]
    %v34 = vld [vmem:[%s3] sm:$0xff]
    %v35 = vld [vmem:[%s3 + $0x8] sm:$0xff]
    %vm36 = vcmask 130048
    %v38 = vsel %vm36, %v31, 0
    %40 = vmatpush.msra.mxu0 0.0
    %41 = vmatpush.msra.mxu0 0.0
    %42 = vmatpush.msra.mxu0 0.0
    %43 = vmatpush.msra.mxu0 0.0
    %44 = vmatpush.msra.mxu0 0.0
    %45 = vmatpush.msra.mxu0 0.0
    %46 = vmatpush.msra.mxu0 0.0
    %47 = vmatpush.msra.mxu0 0.0
    %48 = vmatpush.msra.mxu0 0.0
    %49 = vmatpush.msra.mxu0 0.0
    %50 = vmatpush.msra.mxu0 0.0
    %51 = vmatpush.msra.mxu0 0.0
    %52 = vmatpush.msra.mxu0 0.0
    %53 = vmatpush.msra.mxu0 0.0
    %54 = vmatpush.msra.mxu0 %v35
    %55 = vmatpush.msra.mxu0 %v34
    %56 = vmatmul.f32.gmra.mxu0 %v38
    %v57 = vpop.f32.mrf.mxu0
    %v58 = vadd.f32 0.0, %v57
    %59 = vdwg.mxu0
    %v61 = vsel %vm36, %v30, 0
    %63 = vmatpush.msra.mxu0 0.0
    %64 = vmatpush.msra.mxu0 0.0
    %65 = vmatpush.msra.mxu0 0.0
    %66 = vmatpush.msra.mxu0 0.0
    %67 = vmatpush.msra.mxu0 0.0
    %68 = vmatpush.msra.mxu0 0.0
    %69 = vmatpush.msra.mxu0 0.0
    %70 = vmatpush.msra.mxu0 0.0
    %71 = vmatpush.msra.mxu0 0.0
    %72 = vmatpush.msra.mxu0 0.0
    %73 = vmatpush.msra.mxu0 0.0
    %74 = vmatpush.msra.mxu0 0.0
    %75 = vmatpush.msra.mxu0 0.0
    %76 = vmatpush.msra.mxu0 0.0
    %77 = vmatpush.msra.mxu0 %v33
    %78 = vmatpush.msra.mxu0 %v32
    %79 = vmatmul.f32.gmra.mxu0 %v61
    %v80 = vpop.f32.mrf.mxu0
    %v81 = vadd.f32 %v58, %v80
    %82 = vdwg.mxu0
    %v83 = vld [vmem:[%s7] sm:$0x1]
    %v84 = vld [vmem:[%s7 + $0x1] sm:$0x1]
    %v85 = vld [vmem:[%s7 + $0x2] sm:$0x1]
    %v86 = vperm.slane %v83, 0
    %v87 = vadd.f32 %v81, %v86
    %v88 = vmul.f32 %v87, 0.5
    %v89 = vmul.f32 %v87, 0.70710677
    %v90 = vmul.f32 %v89, %v89
    %v91 = vmin.f32 16.0, %v90
    %v92 = vmul.f32 %v91, 2.1237322e-06
    %v93 = vadd.f32 %v92, 0.00028619796
    %v94 = vmul.f32 %v91, %v93
    %v95 = vadd.f32 %v94, 0.0036580483
    %v96 = vmul.f32 %v91, %v95
    %v97 = vadd.f32 %v96, 0.05243302
    %v98 = vmul.f32 %v91, %v97
    %v99 = vadd.f32 %v98, 0.18741608
    %v100 = vmul.f32 %v91, %v99
    %v101 = vadd.f32 %v100, 1.1283791
    %v102 = vmul.f32 %v89, %v101
    %v103 = vmul.f32 %v91, 3.8918573e-05
    %v104 = vadd.f32 %v103, 0.001143296
    %v105 = vmul.f32 %v91, %v104
    %v106 = vadd.f32 %v105, 0.014752088
    %v107 = vmul.f32 %v91, %v106
    %v108 = vadd.f32 %v107, 0.112945676
    %v109 = vmul.f32 %v91, %v108
    %v110 = vadd.f32 %v109, 0.4994258
    %v111 = vmul.f32 %v91, %v110
    %v112 = vadd.f32 %v111, 1.0
    %v113 = vrcp.pop %v112
    %v114 = vmul.f32 %v112, %v113
    %v115 = vsub.f32 1.0, %v114
    %v116 = vmul.f32 %v113, %v115
    %v117 = vadd.f32 %v113, %v116
    %vm118 = vweird.f32 %v112
    %vm119 = vweird.f32 %v113
    %vm120 = vmor %vm118, %vm119
    %v121 = vsel %vm120, %v113, %v117
    %v122 = vand.u32 2147483647, %v112
    %vm123 = vcmp.eq.f32.partialorder %v122, 8.507059e+37
    %v124 = vand.u32 %v112, 2147483648
    %v125 = vor.u32 1.1754944e-38, %v124
    %v126 = vsel %vm123, %v125, %v121
    %v127 = vmul.f32 %v102, %v126
    %v128 = vmin.f32 %v127, 1.0
    %v129 = vmax.f32 %v128, -1.0
    %v130 = vadd.f32 %v129, 1.0
    %v131 = vmul.f32 %v88, %v130
    %vm132 = vcmask 523264
    %v133 = vsel %vm132, %v131, 0.0
    %v134 = vrot.slane %v133, 4
    %v135 = vadd.f32 %v133, %v134
    %v136 = vrot.slane %v135, 2
    %v137 = vadd.f32 %v135, %v136
    %v138 = vrot.slane %v137, 1
    %v139 = vadd.f32 %v137, %v138
    %v140 = vmul.f32 %v131, %v131
    %v141 = vsel %vm132, %v140, 0.0
    %v142 = vrot.slane %v141, 4
    %v143 = vadd.f32 %v141, %v142
    %v144 = vrot.slane %v143, 2
    %v145 = vadd.f32 %v143, %v144
    %v146 = vrot.slane %v145, 1
    %v147 = vadd.f32 %v145, %v146
    %v148 = vmul.f32 %v139, 0.125
    %v149 = vmul.f32 %v147, 0.125
    %v150 = vmul.f32 %v148, %v148
    %v151 = vsub.f32 %v149, %v150
    %v152 = vmax.f32 %v151, 0.0
    %v153 = vadd.f32 %v152, 1e-05
    %v154 = vrsqrt.pop %v153
    %v155 = vmul.f32 %v154, %v153
    %v156 = vmul.f32 %v155, %v154
    %v157 = vmul.f32 0.5, %v156
    %v158 = vsub.f32 1.5, %v157
    %v159 = vmul.f32 %v154, %v158
    %vm160 = vweird.f32 %v153
    %vm161 = vweird.f32 %v154
    %vm162 = vmor %vm160, %vm161
    %v163 = vsel %vm162, %v154, %v159
    %v164 = vmul.f32 %v84, %v163
    %v165 = vmul.f32 %v148, %v164
    %v166 = vsub.f32 %v85, %v165
    %v167 = vperm.slane %v164, 0
    %v168 = vmul.f32 %v131, %v167
    %v169 = vperm.slane %v166, 0
    %v170 = vadd.f32 %v168, %v169
    %v171 = vld [vmem:[%s4] sm:$0xff]
    %v172 = vld [vmem:[%s4 + $0x8] sm:$0xff]
    %v173 = vld [vmem:[%s4 + $0x10] sm:$0xff]
    %v174 = vld [vmem:[%s4 + $0x18] sm:$0xff]
    %v175 = vld [vmem:[%s4 + $0x20] sm:$0xff]
    %v176 = vld [vmem:[%s4 + $0x28] sm:$0xff]
    %v177 = vld [vmem:[%s4 + $0x30] sm:$0xff]
    %v178 = vld [vmem:[%s4 + $0x38] sm:$0xff]
    %v179 = vld [vmem:[%s7 + $0x3] sm:$0x1]
    %v180 = vld [vmem:[%s7 + $0x4] sm:$0x1]
    %v181 = vld [vmem:[%s7 + $0x5] sm:$0x1]
    %v182 = vperm.slane %v179, 0
    %v184 = vsel %vm132, %v170, 0
    %186 = vmatpush.msra.mxu0 0.0
    %187 = vmatpush.msra.mxu0 0.0
    %188 = vmatpush.msra.mxu0 0.0
    %189 = vmatpush.msra.mxu0 0.0
    %190 = vmatpush.msra.mxu0 0.0
    %191 = vmatpush.msra.mxu0 0.0
    %192 = vmatpush.msra.mxu0 0.0
    %193 = vmatpush.msra.mxu0 0.0
    %194 = vmatpush.msra.mxu0 %v178
    %195 = vmatpush.msra.mxu0 %v177
    %196 = vmatpush.msra.mxu0 %v176
    %197 = vmatpush.msra.mxu0 %v175
    %198 = vmatpush.msra.mxu0 %v174
    %199 = vmatpush.msra.mxu0 %v173
    %200 = vmatpush.msra.mxu0 %v172
    %201 = vmatpush.msra.mxu0 %v171
    %202 = vmatmul.f32.gmra.mxu0 %v184
    %v203 = vpop.f32.mrf.mxu0
    %v204 = vadd.f32 %v182, %v203
    %205 = vdwg.mxu0
    %v206 = vmul.f32 %v204, 0.5
    %v207 = vmul.f32 %v204, 0.70710677
    %v208 = vmul.f32 %v207, %v207
    %v209 = vmin.f32 16.0, %v208
    %v210 = vmul.f32 %v209, 2.1237322e-06
    %v211 = vadd.f32 %v210, 0.00028619796
    %v212 = vmul.f32 %v209, %v211
    %v213 = vadd.f32 %v212, 0.0036580483
    %v214 = vmul.f32 %v209, %v213
    %v215 = vadd.f32 %v214, 0.05243302
    %v216 = vmul.f32 %v209, %v215
    %v217 = vadd.f32 %v216, 0.18741608
    %v218 = vmul.f32 %v209, %v217
    %v219 = vadd.f32 %v218, 1.1283791
    %v220 = vmul.f32 %v207, %v219
    %v221 = vmul.f32 %v209, 3.8918573e-05
    %v222 = vadd.f32 %v221, 0.001143296
    %v223 = vmul.f32 %v209, %v222
    %v224 = vadd.f32 %v223, 0.014752088
    %v225 = vmul.f32 %v209, %v224
    %v226 = vadd.f32 %v225, 0.112945676
    %v227 = vmul.f32 %v209, %v226
    %v228 = vadd.f32 %v227, 0.4994258
    %v229 = vmul.f32 %v209, %v228
    %v230 = vadd.f32 %v229, 1.0
    %v231 = vrcp.pop %v230
    %v232 = vmul.f32 %v230, %v231
    %v233 = vsub.f32 1.0, %v232
    %v234 = vmul.f32 %v231, %v233
    %v235 = vadd.f32 %v231, %v234
    %vm236 = vweird.f32 %v230
    %vm237 = vweird.f32 %v231
    %vm238 = vmor %vm236, %vm237
    %v239 = vsel %vm238, %v231, %v235
    %v240 = vand.u32 2147483647, %v230
    %vm241 = vcmp.eq.f32.partialorder %v240, 8.507059e+37
    %v242 = vand.u32 %v230, 2147483648
    %v243 = vor.u32 1.1754944e-38, %v242
    %v244 = vsel %vm241, %v243, %v239
    %v245 = vmul.f32 %v220, %v244
    %v246 = vmin.f32 %v245, 1.0
    %v247 = vmax.f32 %v246, -1.0
    %v248 = vadd.f32 %v247, 1.0
    %v249 = vmul.f32 %v206, %v248
    %v250 = vrot.slane %v249, 4
    %v251 = vadd.f32 %v249, %v250
    %v252 = vrot.slane %v251, 2
    %v253 = vadd.f32 %v251, %v252
    %v254 = vrot.slane %v253, 1
    %v255 = vadd.f32 %v253, %v254
    %v256 = vmul.f32 %v249, %v249
    %v257 = vrot.slane %v256, 4
    %v258 = vadd.f32 %v256, %v257
    %v259 = vrot.slane %v258, 2
    %v260 = vadd.f32 %v258, %v259
    %v261 = vrot.slane %v260, 1
    %v262 = vadd.f32 %v260, %v261
    %v263 = vmul.f32 %v255, 0.125
    %v264 = vmul.f32 %v262, 0.125
    %v265 = vmul.f32 %v263, %v263
    %v266 = vsub.f32 %v264, %v265
    %v267 = vmax.f32 %v266, 0.0
    %v268 = vadd.f32 %v267, 1e-05
    %v269 = vrsqrt.pop %v268
    %v270 = vmul.f32 %v269, %v268
    %v271 = vmul.f32 %v270, %v269
    %v272 = vmul.f32 0.5, %v271
    %v273 = vsub.f32 1.5, %v272
    %v274 = vmul.f32 %v269, %v273
    %vm275 = vweird.f32 %v268
    %vm276 = vweird.f32 %v269
    %vm277 = vmor %vm275, %vm276
    %v278 = vsel %vm277, %v269, %v274
    %v279 = vmul.f32 %v180, %v278
    %v280 = vmul.f32 %v263, %v279
    %v281 = vsub.f32 %v181, %v280
    %v282 = vperm.slane %v279, 0
    %v283 = vmul.f32 %v249, %v282
    %v284 = vperm.slane %v281, 0
    %v285 = vadd.f32 %v283, %v284
    %v286 = vld [vmem:[%s5] sm:$0xff]
    %v287 = vld [vmem:[%s5 + $0x8] sm:$0xff]
    %v288 = vld [vmem:[%s5 + $0x10] sm:$0xff]
    %v289 = vld [vmem:[%s5 + $0x18] sm:$0xff]
    %v290 = vld [vmem:[%s5 + $0x20] sm:$0xff]
    %v291 = vld [vmem:[%s5 + $0x28] sm:$0xff]
    %v292 = vld [vmem:[%s5 + $0x30] sm:$0xff]
    %v293 = vld [vmem:[%s5 + $0x38] sm:$0xff]
    %v294 = vld [vmem:[%s5 + $0x40] sm:$0xff]
    %v295 = vld [vmem:[%s5 + $0x48] sm:$0xff]
    %v296 = vld [vmem:[%s5 + $0x50] sm:$0xff]
    %v297 = vld [vmem:[%s5 + $0x58] sm:$0xff]
    %v298 = vld [vmem:[%s5 + $0x60] sm:$0xff]
    %v299 = vld [vmem:[%s5 + $0x68] sm:$0xff]
    %v300 = vld [vmem:[%s5 + $0x70] sm:$0xff]
    %v301 = vld [vmem:[%s5 + $0x78] sm:$0xff]
    %v302 = vld [vmem:[%s7 + $0x6] sm:$0x1]
    %v303 = vld [vmem:[%s7 + $0x7] sm:$0x1]
    %v304 = vld [vmem:[%s7 + $0x8] sm:$0x1]
    %v305 = vperm.slane %v302, 0
    %306 = vmatpush.msra.mxu0 %v301
    %307 = vmatpush.msra.mxu0 %v300
    %308 = vmatpush.msra.mxu0 %v299
    %309 = vmatpush.msra.mxu0 %v298
    %310 = vmatpush.msra.mxu0 %v297
    %311 = vmatpush.msra.mxu0 %v296
    %312 = vmatpush.msra.mxu0 %v295
    %313 = vmatpush.msra.mxu0 %v294
    %314 = vmatpush.msra.mxu0 %v293
    %315 = vmatpush.msra.mxu0 %v292
    %316 = vmatpush.msra.mxu0 %v291
    %317 = vmatpush.msra.mxu0 %v290
    %318 = vmatpush.msra.mxu0 %v289
    %319 = vmatpush.msra.mxu0 %v288
    %320 = vmatpush.msra.mxu0 %v287
    %321 = vmatpush.msra.mxu0 %v286
    %322 = vmatmul.f32.gmra.mxu0 %v285
    %v323 = vpop.f32.mrf.mxu0
    %v324 = vadd.f32 %v305, %v323
    %325 = vdwg.mxu0
    %v326 = vmul.f32 %v324, 0.5
    %v327 = vmul.f32 %v324, 0.70710677
    %v328 = vmul.f32 %v327, %v327
    %v329 = vmin.f32 16.0, %v328
    %v330 = vmul.f32 %v329, 2.1237322e-06
    %v331 = vadd.f32 %v330, 0.00028619796
    %v332 = vmul.f32 %v329, %v331
    %v333 = vadd.f32 %v332, 0.0036580483
    %v334 = vmul.f32 %v329, %v333
    %v335 = vadd.f32 %v334, 0.05243302
    %v336 = vmul.f32 %v329, %v335
    %v337 = vadd.f32 %v336, 0.18741608
    %v338 = vmul.f32 %v329, %v337
    %v339 = vadd.f32 %v338, 1.1283791
    %v340 = vmul.f32 %v327, %v339
    %v341 = vmul.f32 %v329, 3.8918573e-05
    %v342 = vadd.f32 %v341, 0.001143296
    %v343 = vmul.f32 %v329, %v342
    %v344 = vadd.f32 %v343, 0.014752088
    %v345 = vmul.f32 %v329, %v344
    %v346 = vadd.f32 %v345, 0.112945676
    %v347 = vmul.f32 %v329, %v346
    %v348 = vadd.f32 %v347, 0.4994258
    %v349 = vmul.f32 %v329, %v348
    %v350 = vadd.f32 %v349, 1.0
    %v351 = vrcp.pop %v350
    %v352 = vmul.f32 %v350, %v351
    %v353 = vsub.f32 1.0, %v352
    %v354 = vmul.f32 %v351, %v353
    %v355 = vadd.f32 %v351, %v354
    %vm356 = vweird.f32 %v350
    %vm357 = vweird.f32 %v351
    %vm358 = vmor %vm356, %vm357
    %v359 = vsel %vm358, %v351, %v355
    %v360 = vand.u32 2147483647, %v350
    %vm361 = vcmp.eq.f32.partialorder %v360, 8.507059e+37
    %v362 = vand.u32 %v350, 2147483648
    %v363 = vor.u32 1.1754944e-38, %v362
    %v364 = vsel %vm361, %v363, %v359
    %v365 = vmul.f32 %v340, %v364
    %v366 = vmin.f32 %v365, 1.0
    %v367 = vmax.f32 %v366, -1.0
    %v368 = vadd.f32 %v367, 1.0
    %v369 = vmul.f32 %v326, %v368
    %v370 = vsel %vm132, %v369, 0.0
    %v371 = vrot.slane %v370, 4
    %v372 = vadd.f32 %v370, %v371
    %v373 = vrot.slane %v372, 2
    %v374 = vadd.f32 %v372, %v373
    %v375 = vrot.slane %v374, 1
    %v376 = vadd.f32 %v374, %v375
    %v377 = vmul.f32 %v369, %v369
    %v378 = vsel %vm132, %v377, 0.0
    %v379 = vrot.slane %v378, 4
    %v380 = vadd.f32 %v378, %v379
    %v381 = vrot.slane %v380, 2
    %v382 = vadd.f32 %v380, %v381
    %v383 = vrot.slane %v382, 1
    %v384 = vadd.f32 %v382, %v383
    %v385 = vmul.f32 %v376, 0.125
    %v386 = vmul.f32 %v384, 0.125
    %v387 = vmul.f32 %v385, %v385
    %v388 = vsub.f32 %v386, %v387
    %v389 = vmax.f32 %v388, 0.0
    %v390 = vadd.f32 %v389, 1e-05
    %v391 = vrsqrt.pop %v390
    %v392 = vmul.f32 %v391, %v390
    %v393 = vmul.f32 %v392, %v391
    %v394 = vmul.f32 0.5, %v393
    %v395 = vsub.f32 1.5, %v394
    %v396 = vmul.f32 %v391, %v395
    %vm397 = vweird.f32 %v390
    %vm398 = vweird.f32 %v391
    %vm399 = vmor %vm397, %vm398
    %v400 = vsel %vm399, %v391, %v396
    %v401 = vmul.f32 %v303, %v400
    %v402 = vmul.f32 %v385, %v401
    %v403 = vsub.f32 %v304, %v402
    %v404 = vperm.slane %v401, 0
    %v405 = vmul.f32 %v369, %v404
    %v406 = vperm.slane %v403, 0
    %v407 = vadd.f32 %v405, %v406
    %v408 = vld [vmem:[%s6] sm:$0xff]
    %v409 = vld [vmem:[%s6 + $0x8] sm:$0xff]
    %v410 = vld [vmem:[%s6 + $0x10] sm:$0xff]
    %v411 = vld [vmem:[%s6 + $0x18] sm:$0xff]
    %v412 = vld [vmem:[%s6 + $0x20] sm:$0xff]
    %v413 = vld [vmem:[%s6 + $0x28] sm:$0xff]
    %v414 = vld [vmem:[%s6 + $0x30] sm:$0xff]
    %v415 = vld [vmem:[%s6 + $0x38] sm:$0xff]
    %v416 = vld [vmem:[%s7 + $0x9] sm:$0x1]
    %v417 = vld [vmem:[%s7 + $0xa] sm:$0x1]
    %v418 = vld [vmem:[%s7 + $0xb] sm:$0x1]
    %v419 = vperm.slane %v416, 0
    %v421 = vsel %vm132, %v407, 0
    %423 = vmatpush.msra.mxu0 0.0
    %424 = vmatpush.msra.mxu0 0.0
    %425 = vmatpush.msra.mxu0 0.0
    %426 = vmatpush.msra.mxu0 0.0
    %427 = vmatpush.msra.mxu0 0.0
    %428 = vmatpush.msra.mxu0 0.0
    %429 = vmatpush.msra.mxu0 0.0
    %430 = vmatpush.msra.mxu0 0.0
    %431 = vmatpush.msra.mxu0 %v415
    %432 = vmatpush.msra.mxu0 %v414
    %433 = vmatpush.msra.mxu0 %v413
    %434 = vmatpush.msra.mxu0 %v412
    %435 = vmatpush.msra.mxu0 %v411
    %436 = vmatpush.msra.mxu0 %v410
    %437 = vmatpush.msra.mxu0 %v409
    %438 = vmatpush.msra.mxu0 %v408
    %439 = vmatmul.f32.gmra.mxu0 %v421
    %v440 = vpop.f32.mrf.mxu0
    %v441 = vadd.f32 %v419, %v440
    %442 = vdwg.mxu0
    %v443 = vmul.f32 %v441, 0.5
    %v444 = vmul.f32 %v441, 0.70710677
    %v445 = vmul.f32 %v444, %v444
    %v446 = vmin.f32 16.0, %v445
    %v447 = vmul.f32 %v446, 2.1237322e-06
    %v448 = vadd.f32 %v447, 0.00028619796
    %v449 = vmul.f32 %v446, %v448
    %v450 = vadd.f32 %v449, 0.0036580483
    %v451 = vmul.f32 %v446, %v450
    %v452 = vadd.f32 %v451, 0.05243302
    %v453 = vmul.f32 %v446, %v452
    %v454 = vadd.f32 %v453, 0.18741608
    %v455 = vmul.f32 %v446, %v454
    %v456 = vadd.f32 %v455, 1.1283791
    %v457 = vmul.f32 %v444, %v456
    %v458 = vmul.f32 %v446, 3.8918573e-05
    %v459 = vadd.f32 %v458, 0.001143296
    %v460 = vmul.f32 %v446, %v459
    %v461 = vadd.f32 %v460, 0.014752088
    %v462 = vmul.f32 %v446, %v461
    %v463 = vadd.f32 %v462, 0.112945676
    %v464 = vmul.f32 %v446, %v463
    %v465 = vadd.f32 %v464, 0.4994258
    %v466 = vmul.f32 %v446, %v465
    %v467 = vadd.f32 %v466, 1.0
    %v468 = vrcp.pop %v467
    %v469 = vmul.f32 %v467, %v468
    %v470 = vsub.f32 1.0, %v469
    %v471 = vmul.f32 %v468, %v470
    %v472 = vadd.f32 %v468, %v471
    %vm473 = vweird.f32 %v467
    %vm474 = vweird.f32 %v468
    %vm475 = vmor %vm473, %vm474
    %v476 = vsel %vm475, %v468, %v472
    %v477 = vand.u32 2147483647, %v467
    %vm478 = vcmp.eq.f32.partialorder %v477, 8.507059e+37
    %v479 = vand.u32 %v467, 2147483648
    %v480 = vor.u32 1.1754944e-38, %v479
    %v481 = vsel %vm478, %v480, %v476
    %v482 = vmul.f32 %v457, %v481
    %v483 = vmin.f32 %v482, 1.0
    %v484 = vmax.f32 %v483, -1.0
    %v485 = vadd.f32 %v484, 1.0
    %v486 = vmul.f32 %v443, %v485
    %vm487 = vcmask 261120
    %v488 = vsel %vm487, %v486, 0.0
    %v489 = vrot.slane %v488, 4
    %v490 = vadd.f32 %v488, %v489
    %v491 = vrot.slane %v490, 2
    %v492 = vadd.f32 %v490, %v491
    %v493 = vrot.slane %v492, 1
    %v494 = vadd.f32 %v492, %v493
    %v495 = vmul.f32 %v486, %v486
    %v496 = vsel %vm487, %v495, 0.0
    %v497 = vrot.slane %v496, 4
    %v498 = vadd.f32 %v496, %v497
    %v499 = vrot.slane %v498, 2
    %v500 = vadd.f32 %v498, %v499
    %v501 = vrot.slane %v500, 1
    %v502 = vadd.f32 %v500, %v501
    %v503 = vmul.f32 %v494, 0.125
    %v504 = vmul.f32 %v502, 0.125
    %v505 = vmul.f32 %v503, %v503
    %v506 = vsub.f32 %v504, %v505
    %v507 = vmax.f32 %v506, 0.0
    %v508 = vadd.f32 %v507, 1e-05
    %v509 = vrsqrt.pop %v508
    %v510 = vmul.f32 %v509, %v508
    %v511 = vmul.f32 %v510, %v509
    %v512 = vmul.f32 0.5, %v511
    %v513 = vsub.f32 1.5, %v512
    %v514 = vmul.f32 %v509, %v513
    %vm515 = vweird.f32 %v508
    %vm516 = vweird.f32 %v509
    %vm517 = vmor %vm515, %vm516
    %v518 = vsel %vm517, %v509, %v514
    %v519 = vmul.f32 %v417, %v518
    %v520 = vmul.f32 %v503, %v519
    %v521 = vsub.f32 %v418, %v520
    %v522 = vperm.slane %v519, 0
    %v523 = vmul.f32 %v486, %v522
    %v524 = vperm.slane %v521, 0
    %v525 = vadd.f32 %v523, %v524
    %526 = vst.msk [vmem:[#allocation2] sm:$0xff] %vm487, %v525
    // Predicated region
    $region34: #{tpu_custom_call.1} parent=1 // pred_check
      _
    $region35: #{tpu_custom_call.1} parent=1 // pred_check_branch
      %528 = sbr.rel (0) target = $region37
    $region36: #{tpu_custom_call.1} parent=1 // pred_region
      %530 = vsyncadd [#allocation3], 0
      %s532 = sshll.u32 [#allocation2], 4
      %s533 = int_to_ptr.vmem [resolvable:$true] %s532
      %s534 = sshll.u32 %s8, 4
      %s535 = int_to_ptr.hbm [resolvable:$true] %s534
      %537 = dma.vmem_to_hbm [thread:$0]  %s533, 128, %s535, [#allocation3]
    $region37: #{tpu_custom_call.1} parent=1 // pred_fallthru
      _
    // Predicated region
    $region38: #{tpu_custom_call.1} parent=1 // pred_check
      _
    $region39: #{tpu_custom_call.1} parent=1 // pred_check_branch
      %539 = sbr.rel (0) target = $region41
    $region40: #{tpu_custom_call.1} parent=1 // pred_region
      %541 = dma.done [#allocation3], 128
    $region41: #{tpu_custom_call.1} parent=1 // pred_fallthru
      _
    %542 = vsyncpa [#allocation3], 1

</llo_original>
